<compile_context>
chip_gen: v7x
topology: tpu7x:2x2x1
jax: 0.10.0
libtpu: 0.0.40
codegen_flags: <defaults>
</compile_context>

<pallas_src>
import jax
import jax.numpy as jnp
from jax import lax
from jax.experimental import pallas as pl
from jax.experimental.pallas import tpu as pltpu

N, C, H, W = 2, 16, 8, 8      # batch, channels (512 -> 16), spatial
KH = KW = 3                   # input_trigger conv kernel
CTX = 10                      # context features
EPS = 1e-5                    # BatchNorm2d eps
OFF = 8                       # sublane-aligned W offset of the interior in the scratch
WPAD = OFF + W + 1            # scratch W extent: zero col at OFF-1 and OFF+W


def conv_bn_ctx_kernel(x_ref, cw_ref, lw_ref, vec_ref, ctx_ref, o_ref, xp_ref):
    """x_ref:  [N, H, W, C]        unpadded NHWC input
       cw_ref: [KH, KW, C, C]      conv weight, HWIO
       lw_ref: [CTX, C]            context Linear weight
       vec_ref:[3, C]              rows = (gamma, beta, linear bias)
       ctx_ref:[N, CTX]            context
       o_ref:  [N, H, W, C]        output (NHWC)
       xp_ref: [N, H+2, WPAD, C]   VMEM scratch holding the zero-padded input."""
    # --- pad=1 inside the kernel: zero-fill, then aligned full-tile interior copy ---
    xp_ref[...] = jnp.zeros_like(xp_ref)
    xp_ref[:, 1:1 + H, OFF:OFF + W, :] = x_ref[...]

    # --- 3x3 "same" conv: batch merged into M -> 9 (128,16)x(16,16) MXU taps --------
    acc = None
    for ky in range(KH):
        for kx in range(KW):
            s = OFF - 1 + kx                      # W slice start: 7 / 8 / 9
            patch = xp_ref[:, ky:ky + H, s:s + W, :].reshape(N * H * W, C)
            tap = jnp.dot(patch, cw_ref[ky, kx],
                          preferred_element_type=jnp.float32)
            acc = tap if acc is None else acc + tap
    # conv bias intentionally omitted: a per-channel constant is removed exactly by
    # the training-mode BatchNorm mean subtraction below.

    # --- BatchNorm2d (training mode), folded with the context add into scale/shift --
    inv_m = 1.0 / (N * H * W)
    mean = jnp.sum(acc, axis=0, keepdims=True) * inv_m                 # [1, C]
    var = jnp.sum(acc * acc, axis=0, keepdims=True) * inv_m - mean * mean
    scale = vec_ref[0:1, :] * lax.rsqrt(var + EPS)                     # gamma * rsqrt (EUP)
    ctx = jnp.dot(ctx_ref[...], lw_ref[...],
                  preferred_element_type=jnp.float32) + vec_ref[2:3, :]  # [N, C]
    shift = vec_ref[1:2, :] - mean * scale + ctx                       # [N, C]

    y = acc.reshape(N, H * W, C) * scale + shift[:, None, :]           # one mul + one add
    o_ref[...] = y.reshape(N, H, W, C).astype(o_ref.dtype)


@jax.jit
def conv_less_forward(trigger_nchw, context, params):
    conv_w, conv_b, gamma, beta, lin_w, lin_b = params
    del conv_b  # exactly cancelled by training-mode BN mean subtraction (see kernel)
    x_nhwc = jnp.transpose(trigger_nchw, (0, 2, 3, 1))                 # NCHW -> NHWC
    w_hwio = jnp.transpose(conv_w, (2, 3, 1, 0))                       # OIHW -> HWIO
    vecs = jnp.stack([gamma, beta, lin_b], axis=0)                     # [3, C]

    vmem = pl.BlockSpec(memory_space=pltpu.MemorySpace.VMEM)
    out_nhwc = pl.pallas_call(
        conv_bn_ctx_kernel,
        out_shape=jax.ShapeDtypeStruct((N, H, W, C), jnp.float32),
        in_specs=[vmem] * 5,
        out_specs=vmem,
        scratch_shapes=[pltpu.VMEM((N, H + 2, WPAD, C), jnp.float32)],
    )(x_nhwc, w_hwio, lin_w, vecs, context)
    return jnp.transpose(out_nhwc, (0, 3, 1, 2))                       # NHWC -> NCHW


def reference(trigger_nchw, context, params):
    conv_w, conv_b, gamma, beta, lin_w, lin_b = params
    y = lax.conv_general_dilated(trigger_nchw, conv_w, (1, 1), ((1, 1), (1, 1)),
                                 dimension_numbers=("NCHW", "OIHW", "NCHW"))
    y = y + conv_b[None, :, None, None]
    mean = y.mean(axis=(0, 2, 3), keepdims=True)
    var = ((y - mean) ** 2).mean(axis=(0, 2, 3), keepdims=True)
    y = (y - mean) / jnp.sqrt(var + EPS)
    y = y * gamma[None, :, None, None] + beta[None, :, None, None]
    ctx = context @ lin_w + lin_b
    return y + ctx[:, :, None, None]


if __name__ == "__main__":
    key = jax.random.PRNGKey(0)
    k1, k2, k3, k4, k5, k6 = jax.random.split(key, 6)

    # Deterministic parameter init (shapes per the module __init__).  The module calls
    # nn.init.constant(weight, 0); we use small nonzero conv weights here so the self-
    # test actually exercises the conv path (forward-pass math is identical either way).
    kb = 1.0 / (C * KH * KW) ** 0.5
    conv_w = jax.random.uniform(k6, (C, C, KH, KW), jnp.float32, -kb, kb)
    conv_b = jax.random.uniform(k1, (C,), jnp.float32, -kb, kb)
    gamma = jnp.ones((C,), jnp.float32)                    # BatchNorm2d affine defaults
    beta = jnp.zeros((C,), jnp.float32)
    kl = 1.0 / CTX ** 0.5
    lin_w = jax.random.uniform(k2, (CTX, C), jnp.float32, -kl, kl)
    lin_b = jax.random.uniform(k3, (C,), jnp.float32, -kl, kl)
    params = (conv_w, conv_b, gamma, beta, lin_w, lin_b)

    trigger = jax.random.normal(k4, (N, C, H, W), jnp.float32)   # NCHW, like PyTorch
    context = jax.random.normal(k5, (N, CTX), jnp.float32)

    out = jax.block_until_ready(conv_less_forward(trigger, context, params))
    ref = jax.block_until_ready(reference(trigger, context, params))

    assert out.shape == (N, C, H, W) and out.dtype == jnp.float32
    assert jnp.allclose(out, ref, atol=1e-4, rtol=1e-4), \
        f"max err {jnp.max(jnp.abs(out - ref))}"
    print("KERNEL_OK")
</pallas_src>

<mosaic_0001>
module attributes {stable_mosaic.version = 11 : i64} {
  func.func @conv_bn_ctx_kernel(%arg0: memref<2x8x8x16xf32, #tpu.memory_space<vmem>>, %arg1: memref<3x3x16x16xf32, #tpu.memory_space<vmem>>, %arg2: memref<10x16xf32, #tpu.memory_space<vmem>>, %arg3: memref<3x16xf32, #tpu.memory_space<vmem>>, %arg4: memref<2x10xf32, #tpu.memory_space<vmem>>, %arg5: memref<2x8x8x16xf32, #tpu.memory_space<vmem>>, %arg6: memref<2x10x17x16xf32, #tpu.memory_space<vmem>>) attributes {dimension_semantics = [], scalar_prefetch = 0 : i64, scratch_operands = 1 : i64, tpu.core_type = #tpu.core_type<tc>} {
    %cst = arith.constant 0.000000e+00 : f32
    %0 = vector.broadcast %cst : f32 to vector<2x10x17x16xf32>
    %c0 = arith.constant 0 : index
    %c0_0 = arith.constant 0 : index
    %c0_1 = arith.constant 0 : index
    %c0_2 = arith.constant 0 : index
    %1 = vector.load %arg6[%c0, %c0_0, %c0_1, %c0_2] : memref<2x10x17x16xf32, #tpu.memory_space<vmem>>, vector<2x10x17x16xf32>
    tpu.vector_store %arg6[%c0, %c0_0, %c0_1, %c0_2], %0 {strides = array<i32>} : memref<2x10x17x16xf32, #tpu.memory_space<vmem>>, vector<2x10x17x16xf32>,
    %c0_3 = arith.constant 0 : index
    %c0_4 = arith.constant 0 : index
    %c0_5 = arith.constant 0 : index
    %c0_6 = arith.constant 0 : index
    %2 = vector.load %arg0[%c0_3, %c0_4, %c0_5, %c0_6] : memref<2x8x8x16xf32, #tpu.memory_space<vmem>>, vector<2x8x8x16xf32>
    %c0_7 = arith.constant 0 : index
    %c1 = arith.constant 1 : index
    %c8 = arith.constant 8 : index
    %c0_8 = arith.constant 0 : index
    %3 = vector.load %arg6[%c0_7, %c1, %c8, %c0_8] : memref<2x10x17x16xf32, #tpu.memory_space<vmem>>, vector<2x8x8x16xf32>
    tpu.vector_store %arg6[%c0_7, %c1, %c8, %c0_8], %2 {strides = array<i32>} : memref<2x10x17x16xf32, #tpu.memory_space<vmem>>, vector<2x8x8x16xf32>,
    %c0_9 = arith.constant 0 : index
    %c0_10 = arith.constant 0 : index
    %c7 = arith.constant 7 : index
    %c0_11 = arith.constant 0 : index
    %4 = vector.load %arg6[%c0_9, %c0_10, %c7, %c0_11] : memref<2x10x17x16xf32, #tpu.memory_space<vmem>>, vector<2x8x8x16xf32>
    %5 = vector.shape_cast %4 : vector<2x8x8x16xf32> to vector<128x16xf32>
    %c0_12 = arith.constant 0 : index
    %c0_13 = arith.constant 0 : index
    %c0_14 = arith.constant 0 : index
    %c0_15 = arith.constant 0 : index
    %6 = vector.load %arg1[%c0_12, %c0_13, %c0_14, %c0_15] : memref<3x3x16x16xf32, #tpu.memory_space<vmem>>, vector<1x1x16x16xf32>
    %7 = vector.shape_cast %6 : vector<1x1x16x16xf32> to vector<16x16xf32>
    %cst_16 = arith.constant dense<0.000000e+00> : vector<128x16xf32>
    %8 = tpu.matmul %5, %7, %cst_16 {dimension_numbers = #tpu.dot_dimension_numbers<[1], [0], [0], [1], [0, 0, 1, 1], [], []>} : vector<128x16xf32>, vector<16x16xf32>, vector<128x16xf32> -> vector<128x16xf32>
    %c0_17 = arith.constant 0 : index
    %c0_18 = arith.constant 0 : index
    %c8_19 = arith.constant 8 : index
    %c0_20 = arith.constant 0 : index
    %9 = vector.load %arg6[%c0_17, %c0_18, %c8_19, %c0_20] : memref<2x10x17x16xf32, #tpu.memory_space<vmem>>, vector<2x8x8x16xf32>
    %10 = vector.shape_cast %9 : vector<2x8x8x16xf32> to vector<128x16xf32>
    %c0_21 = arith.constant 0 : index
    %c1_22 = arith.constant 1 : index
    %c0_23 = arith.constant 0 : index
    %c0_24 = arith.constant 0 : index
    %11 = vector.load %arg1[%c0_21, %c1_22, %c0_23, %c0_24] : memref<3x3x16x16xf32, #tpu.memory_space<vmem>>, vector<1x1x16x16xf32>
    %12 = vector.shape_cast %11 : vector<1x1x16x16xf32> to vector<16x16xf32>
    %cst_25 = arith.constant dense<0.000000e+00> : vector<128x16xf32>
    %13 = tpu.matmul %10, %12, %cst_25 {dimension_numbers = #tpu.dot_dimension_numbers<[1], [0], [0], [1], [0, 0, 1, 1], [], []>} : vector<128x16xf32>, vector<16x16xf32>, vector<128x16xf32> -> vector<128x16xf32>
    %14 = arith.addf %8, %13 : vector<128x16xf32>
    %c0_26 = arith.constant 0 : index
    %c0_27 = arith.constant 0 : index
    %c9 = arith.constant 9 : index
    %c0_28 = arith.constant 0 : index
    %15 = vector.load %arg6[%c0_26, %c0_27, %c9, %c0_28] : memref<2x10x17x16xf32, #tpu.memory_space<vmem>>, vector<2x8x8x16xf32>
    %16 = vector.shape_cast %15 : vector<2x8x8x16xf32> to vector<128x16xf32>
    %c0_29 = arith.constant 0 : index
    %c2 = arith.constant 2 : index
    %c0_30 = arith.constant 0 : index
    %c0_31 = arith.constant 0 : index
    %17 = vector.load %arg1[%c0_29, %c2, %c0_30, %c0_31] : memref<3x3x16x16xf32, #tpu.memory_space<vmem>>, vector<1x1x16x16xf32>
    %18 = vector.shape_cast %17 : vector<1x1x16x16xf32> to vector<16x16xf32>
    %cst_32 = arith.constant dense<0.000000e+00> : vector<128x16xf32>
    %19 = tpu.matmul %16, %18, %cst_32 {dimension_numbers = #tpu.dot_dimension_numbers<[1], [0], [0], [1], [0, 0, 1, 1], [], []>} : vector<128x16xf32>, vector<16x16xf32>, vector<128x16xf32> -> vector<128x16xf32>
    %20 = arith.addf %14, %19 : vector<128x16xf32>
    %c0_33 = arith.constant 0 : index
    %c1_34 = arith.constant 1 : index
    %c7_35 = arith.constant 7 : index
    %c0_36 = arith.constant 0 : index
    %21 = vector.load %arg6[%c0_33, %c1_34, %c7_35, %c0_36] : memref<2x10x17x16xf32, #tpu.memory_space<vmem>>, vector<2x8x8x16xf32>
    %22 = vector.shape_cast %21 : vector<2x8x8x16xf32> to vector<128x16xf32>
    %c1_37 = arith.constant 1 : index
    %c0_38 = arith.constant 0 : index
    %c0_39 = arith.constant 0 : index
    %c0_40 = arith.constant 0 : index
    %23 = vector.load %arg1[%c1_37, %c0_38, %c0_39, %c0_40] : memref<3x3x16x16xf32, #tpu.memory_space<vmem>>, vector<1x1x16x16xf32>
    %24 = vector.shape_cast %23 : vector<1x1x16x16xf32> to vector<16x16xf32>
    %cst_41 = arith.constant dense<0.000000e+00> : vector<128x16xf32>
    %25 = tpu.matmul %22, %24, %cst_41 {dimension_numbers = #tpu.dot_dimension_numbers<[1], [0], [0], [1], [0, 0, 1, 1], [], []>} : vector<128x16xf32>, vector<16x16xf32>, vector<128x16xf32> -> vector<128x16xf32>
    %26 = arith.addf %20, %25 : vector<128x16xf32>
    %c0_42 = arith.constant 0 : index
    %c1_43 = arith.constant 1 : index
    %c8_44 = arith.constant 8 : index
    %c0_45 = arith.constant 0 : index
    %27 = vector.load %arg6[%c0_42, %c1_43, %c8_44, %c0_45] : memref<2x10x17x16xf32, #tpu.memory_space<vmem>>, vector<2x8x8x16xf32>
    %28 = vector.shape_cast %27 : vector<2x8x8x16xf32> to vector<128x16xf32>
    %c1_46 = arith.constant 1 : index
    %c1_47 = arith.constant 1 : index
    %c0_48 = arith.constant 0 : index
    %c0_49 = arith.constant 0 : index
    %29 = vector.load %arg1[%c1_46, %c1_47, %c0_48, %c0_49] : memref<3x3x16x16xf32, #tpu.memory_space<vmem>>, vector<1x1x16x16xf32>
    %30 = vector.shape_cast %29 : vector<1x1x16x16xf32> to vector<16x16xf32>
    %cst_50 = arith.constant dense<0.000000e+00> : vector<128x16xf32>
    %31 = tpu.matmul %28, %30, %cst_50 {dimension_numbers = #tpu.dot_dimension_numbers<[1], [0], [0], [1], [0, 0, 1, 1], [], []>} : vector<128x16xf32>, vector<16x16xf32>, vector<128x16xf32> -> vector<128x16xf32>
    %32 = arith.addf %26, %31 : vector<128x16xf32>
    %c0_51 = arith.constant 0 : index
    %c1_52 = arith.constant 1 : index
    %c9_53 = arith.constant 9 : index
    %c0_54 = arith.constant 0 : index
    %33 = vector.load %arg6[%c0_51, %c1_52, %c9_53, %c0_54] : memref<2x10x17x16xf32, #tpu.memory_space<vmem>>, vector<2x8x8x16xf32>
    %34 = vector.shape_cast %33 : vector<2x8x8x16xf32> to vector<128x16xf32>
    %c1_55 = arith.constant 1 : index
    %c2_56 = arith.constant 2 : index
    %c0_57 = arith.constant 0 : index
    %c0_58 = arith.constant 0 : index
    %35 = vector.load %arg1[%c1_55, %c2_56, %c0_57, %c0_58] : memref<3x3x16x16xf32, #tpu.memory_space<vmem>>, vector<1x1x16x16xf32>
    %36 = vector.shape_cast %35 : vector<1x1x16x16xf32> to vector<16x16xf32>
    %cst_59 = arith.constant dense<0.000000e+00> : vector<128x16xf32>
    %37 = tpu.matmul %34, %36, %cst_59 {dimension_numbers = #tpu.dot_dimension_numbers<[1], [0], [0], [1], [0, 0, 1, 1], [], []>} : vector<128x16xf32>, vector<16x16xf32>, vector<128x16xf32> -> vector<128x16xf32>
    %38 = arith.addf %32, %37 : vector<128x16xf32>
    %c0_60 = arith.constant 0 : index
    %c2_61 = arith.constant 2 : index
    %c7_62 = arith.constant 7 : index
    %c0_63 = arith.constant 0 : index
    %39 = vector.load %arg6[%c0_60, %c2_61, %c7_62, %c0_63] : memref<2x10x17x16xf32, #tpu.memory_space<vmem>>, vector<2x8x8x16xf32>
    %40 = vector.shape_cast %39 : vector<2x8x8x16xf32> to vector<128x16xf32>
    %c2_64 = arith.constant 2 : index
    %c0_65 = arith.constant 0 : index
    %c0_66 = arith.constant 0 : index
    %c0_67 = arith.constant 0 : index
    %41 = vector.load %arg1[%c2_64, %c0_65, %c0_66, %c0_67] : memref<3x3x16x16xf32, #tpu.memory_space<vmem>>, vector<1x1x16x16xf32>
    %42 = vector.shape_cast %41 : vector<1x1x16x16xf32> to vector<16x16xf32>
    %cst_68 = arith.constant dense<0.000000e+00> : vector<128x16xf32>
    %43 = tpu.matmul %40, %42, %cst_68 {dimension_numbers = #tpu.dot_dimension_numbers<[1], [0], [0], [1], [0, 0, 1, 1], [], []>} : vector<128x16xf32>, vector<16x16xf32>, vector<128x16xf32> -> vector<128x16xf32>
    %44 = arith.addf %38, %43 : vector<128x16xf32>
    %c0_69 = arith.constant 0 : index
    %c2_70 = arith.constant 2 : index
    %c8_71 = arith.constant 8 : index
    %c0_72 = arith.constant 0 : index
    %45 = vector.load %arg6[%c0_69, %c2_70, %c8_71, %c0_72] : memref<2x10x17x16xf32, #tpu.memory_space<vmem>>, vector<2x8x8x16xf32>
    %46 = vector.shape_cast %45 : vector<2x8x8x16xf32> to vector<128x16xf32>
    %c2_73 = arith.constant 2 : index
    %c1_74 = arith.constant 1 : index
    %c0_75 = arith.constant 0 : index
    %c0_76 = arith.constant 0 : index
    %47 = vector.load %arg1[%c2_73, %c1_74, %c0_75, %c0_76] : memref<3x3x16x16xf32, #tpu.memory_space<vmem>>, vector<1x1x16x16xf32>
    %48 = vector.shape_cast %47 : vector<1x1x16x16xf32> to vector<16x16xf32>
    %cst_77 = arith.constant dense<0.000000e+00> : vector<128x16xf32>
    %49 = tpu.matmul %46, %48, %cst_77 {dimension_numbers = #tpu.dot_dimension_numbers<[1], [0], [0], [1], [0, 0, 1, 1], [], []>} : vector<128x16xf32>, vector<16x16xf32>, vector<128x16xf32> -> vector<128x16xf32>
    %50 = arith.addf %44, %49 : vector<128x16xf32>
    %c0_78 = arith.constant 0 : index
    %c2_79 = arith.constant 2 : index
    %c9_80 = arith.constant 9 : index
    %c0_81 = arith.constant 0 : index
    %51 = vector.load %arg6[%c0_78, %c2_79, %c9_80, %c0_81] : memref<2x10x17x16xf32, #tpu.memory_space<vmem>>, vector<2x8x8x16xf32>
    %52 = vector.shape_cast %51 : vector<2x8x8x16xf32> to vector<128x16xf32>
    %c2_82 = arith.constant 2 : index
    %c2_83 = arith.constant 2 : index
    %c0_84 = arith.constant 0 : index
    %c0_85 = arith.constant 0 : index
    %53 = vector.load %arg1[%c2_82, %c2_83, %c0_84, %c0_85] : memref<3x3x16x16xf32, #tpu.memory_space<vmem>>, vector<1x1x16x16xf32>
    %54 = vector.shape_cast %53 : vector<1x1x16x16xf32> to vector<16x16xf32>
    %cst_86 = arith.constant dense<0.000000e+00> : vector<128x16xf32>
    %55 = tpu.matmul %52, %54, %cst_86 {dimension_numbers = #tpu.dot_dimension_numbers<[1], [0], [0], [1], [0, 0, 1, 1], [], []>} : vector<128x16xf32>, vector<16x16xf32>, vector<128x16xf32> -> vector<128x16xf32>
    %56 = arith.addf %50, %55 : vector<128x16xf32>
    %cst_87 = arith.constant dense<0.000000e+00> : vector<16xf32>
    %57 = vector.multi_reduction <add>, %56, %cst_87 [0] : vector<128x16xf32> to vector<16xf32>
    %58 = vector.shape_cast %57 : vector<16xf32> to vector<1x16xf32>
    %cst_88 = arith.constant 7.812500e-03 : f32
    %59 = vector.broadcast %cst_88 : f32 to vector<1x16xf32>
    %60 = arith.mulf %58, %59 : vector<1x16xf32>
    %61 = arith.mulf %56, %56 : vector<128x16xf32>
    %cst_89 = arith.constant dense<0.000000e+00> : vector<16xf32>
    %62 = vector.multi_reduction <add>, %61, %cst_89 [0] : vector<128x16xf32> to vector<16xf32>
    %63 = vector.shape_cast %62 : vector<16xf32> to vector<1x16xf32>
    %cst_90 = arith.constant 7.812500e-03 : f32
    %64 = vector.broadcast %cst_90 : f32 to vector<1x16xf32>
    %65 = arith.mulf %63, %64 : vector<1x16xf32>
    %66 = arith.mulf %60, %60 : vector<1x16xf32>
    %67 = arith.subf %65, %66 : vector<1x16xf32>
    %c0_91 = arith.constant 0 : index
    %c0_92 = arith.constant 0 : index
    %68 = vector.load %arg3[%c0_91, %c0_92] : memref<3x16xf32, #tpu.memory_space<vmem>>, vector<1x16xf32>
    %cst_93 = arith.constant 9.99999974E-6 : f32
    %69 = vector.broadcast %cst_93 : f32 to vector<1x16xf32>
    %70 = arith.addf %67, %69 : vector<1x16xf32>
    %71 = math.rsqrt %70 : vector<1x16xf32>
    %72 = arith.mulf %68, %71 : vector<1x16xf32>
    %c0_94 = arith.constant 0 : index
    %c0_95 = arith.constant 0 : index
    %73 = vector.load %arg4[%c0_94, %c0_95] : memref<2x10xf32, #tpu.memory_space<vmem>>, vector<2x10xf32>
    %c0_96 = arith.constant 0 : index
    %c0_97 = arith.constant 0 : index
    %74 = vector.load %arg2[%c0_96, %c0_97] : memref<10x16xf32, #tpu.memory_space<vmem>>, vector<10x16xf32>
    %cst_98 = arith.constant dense<0.000000e+00> : vector<2x16xf32>
    %75 = tpu.matmul %73, %74, %cst_98 {dimension_numbers = #tpu.dot_dimension_numbers<[1], [0], [0], [1], [0, 0, 1, 1], [], []>} : vector<2x10xf32>, vector<10x16xf32>, vector<2x16xf32> -> vector<2x16xf32>
    %c2_99 = arith.constant 2 : index
    %c0_100 = arith.constant 0 : index
    %76 = vector.load %arg3[%c2_99, %c0_100] : memref<3x16xf32, #tpu.memory_space<vmem>>, vector<1x16xf32>
    %77 = vector.broadcast %76 : vector<1x16xf32> to vector<2x16xf32>
    %78 = arith.addf %75, %77 : vector<2x16xf32>
    %c1_101 = arith.constant 1 : index
    %c0_102 = arith.constant 0 : index
    %79 = vector.load %arg3[%c1_101, %c0_102] : memref<3x16xf32, #tpu.memory_space<vmem>>, vector<1x16xf32>
    %80 = arith.mulf %60, %72 : vector<1x16xf32>
    %81 = arith.subf %79, %80 : vector<1x16xf32>
    %82 = vector.broadcast %81 : vector<1x16xf32> to vector<2x16xf32>
    %83 = arith.addf %82, %78 : vector<2x16xf32>
    %84 = vector.shape_cast %56 : vector<128x16xf32> to vector<2x64x16xf32>
    %85 = vector.shape_cast %72 : vector<1x16xf32> to vector<1x1x16xf32>
    %86 = vector.broadcast %85 : vector<1x1x16xf32> to vector<2x64x16xf32>
    %87 = arith.mulf %84, %86 : vector<2x64x16xf32>
    %88 = vector.shape_cast %83 : vector<2x16xf32> to vector<2x1x16xf32>
    %89 = vector.broadcast %88 : vector<2x1x16xf32> to vector<2x64x16xf32>
    %90 = arith.addf %87, %89 : vector<2x64x16xf32>
    %91 = vector.shape_cast %90 : vector<2x64x16xf32> to vector<2x8x8x16xf32>
    %c0_103 = arith.constant 0 : index
    %c0_104 = arith.constant 0 : index
    %c0_105 = arith.constant 0 : index
    %c0_106 = arith.constant 0 : index
    %92 = vector.load %arg5[%c0_103, %c0_104, %c0_105, %c0_106] : memref<2x8x8x16xf32, #tpu.memory_space<vmem>>, vector<2x8x8x16xf32>
    tpu.vector_store %arg5[%c0_103, %c0_104, %c0_105, %c0_106], %91 {strides = array<i32>} : memref<2x8x8x16xf32, #tpu.memory_space<vmem>>, vector<2x8x8x16xf32>,
    return
  }
}

</mosaic_0001>

<llo_original>
// kernel: conv_less_forward.1
$region0: #{conv_less_forward.1}
  #allocation0 [shape = 'u32[]', space=smem, size = 0x4, offset = 0x4, fixed_abs, tag = 'smem constant byte address 0x4 - core index']
  #allocation1 [shape = 'u32[144,128]{1,0:T(1,128)}', space=vmem, size = 0x12000, scoped, tag = 'internal scratch']
  #allocation2 [shape = 'f32[2,10,17,16]{3,2,1,0:T(8,128)}', space=vmem, size = 0x3c000, scoped, tag = 'scratch operand']
  %s0 = inlined_call_operand.vmem [shape: f32[2,8,8,16], index: 0, kind: input, shape index: {}]
  %s1 = inlined_call_operand.vmem [shape: f32[3,3,16,16], index: 1, kind: input, shape index: {}]
  %s2 = inlined_call_operand.vmem [shape: f32[10,16], index: 2, kind: input, shape index: {}]
  %s3 = inlined_call_operand.vmem [shape: f32[3,16], index: 3, kind: input, shape index: {}]
  %s4 = inlined_call_operand.vmem [shape: f32[2,10], index: 4, kind: input, shape index: {}]
  %s5 = inlined_call_operand.hbm [shape: f32[2,8,8,16], index: 5, kind: output, shape index: {}]
  %s6 = sld [smem:[#allocation0]]
  $region30: #{conv_less_forward.1} parent=0
    _
  %s8 = ssub.s32 1, %s6
  %s9 = scalar_select 0, %s8, %s6
  $region1: #{conv_less_forward.1} parent=0
    #allocation3 [shape = 'u8[65536]{0}', space=vmem, size = 0x10000, scoped, tag = 'output window, operand 0, single buffered']
    #allocation4 [shape = 's32[1]{0}', space=sflag, size = 0x4, scoped, tag = 'scoped memory for conv_less_forward.1']
    %10 = vsyncpa [#allocation4], 0
    // Predicated region
    $region2: #{conv_less_forward.1} parent=1 // pred_check
      _
    $region3: #{conv_less_forward.1} parent=1 // pred_check_branch
      %12 = sbr.rel (0) target = $region5
    $region4: #{conv_less_forward.1} parent=1 // pred_region
      _
    $region5: #{conv_less_forward.1} parent=1 // pred_fallthru
      _
    // Predicated region
    $region6: #{conv_less_forward.1} parent=1 // pred_check
      _
    $region7: #{conv_less_forward.1} parent=1 // pred_check_branch
      %14 = sbr.rel (0) target = $region9
    $region8: #{conv_less_forward.1} parent=1 // pred_region
      _
    $region9: #{conv_less_forward.1} parent=1 // pred_fallthru
      _
    // Predicated region
    $region10: #{conv_less_forward.1} parent=1 // pred_check
      _
    $region11: #{conv_less_forward.1} parent=1 // pred_check_branch
      %16 = sbr.rel (0) target = $region13
    $region12: #{conv_less_forward.1} parent=1 // pred_region
      _
    $region13: #{conv_less_forward.1} parent=1 // pred_fallthru
      _
    // Predicated region
    $region14: #{conv_less_forward.1} parent=1 // pred_check
      _
    $region15: #{conv_less_forward.1} parent=1 // pred_check_branch
      %18 = sbr.rel (0) target = $region17
    $region16: #{conv_less_forward.1} parent=1 // pred_region
      _
    $region17: #{conv_less_forward.1} parent=1 // pred_fallthru
      _
    // Predicated region
    $region18: #{conv_less_forward.1} parent=1 // pred_check
      _
    $region19: #{conv_less_forward.1} parent=1 // pred_check_branch
      %20 = sbr.rel (0) target = $region21
    $region20: #{conv_less_forward.1} parent=1 // pred_region
      _
    $region21: #{conv_less_forward.1} parent=1 // pred_fallthru
      _
    %vm21 = vcmask 130048
    %22 = vst.msk [vmem:[#allocation2] sm:$0xff] %vm21, 0.0
    %23 = vst.msk [vmem:[#allocation2 + $0x8] sm:$0xff] %vm21, 0.0
    %vm24 = vcmask 122880
    %25 = vst.msk [vmem:[#allocation2 + $0x10] sm:$0x1] %vm24, 0.0
    %26 = vst.msk [vmem:[#allocation2 + $0x18] sm:$0xff] %vm21, 0.0
    %27 = vst.msk [vmem:[#allocation2 + $0x20] sm:$0xff] %vm21, 0.0
    %28 = vst.msk [vmem:[#allocation2 + $0x28] sm:$0x1] %vm24, 0.0
    %29 = vst.msk [vmem:[#allocation2 + $0x30] sm:$0xff] %vm21, 0.0
    %30 = vst.msk [vmem:[#allocation2 + $0x38] sm:$0xff] %vm21, 0.0
    %31 = vst.msk [vmem:[#allocation2 + $0x40] sm:$0x1] %vm24, 0.0
    %32 = vst.msk [vmem:[#allocation2 + $0x48] sm:$0xff] %vm21, 0.0
    %33 = vst.msk [vmem:[#allocation2 + $0x50] sm:$0xff] %vm21, 0.0
    %34 = vst.msk [vmem:[#allocation2 + $0x58] sm:$0x1] %vm24, 0.0
    %35 = vst.msk [vmem:[#allocation2 + $0x60] sm:$0xff] %vm21, 0.0
    %36 = vst.msk [vmem:[#allocation2 + $0x68] sm:$0xff] %vm21, 0.0
    %37 = vst.msk [vmem:[#allocation2 + $0x70] sm:$0x1] %vm24, 0.0
    %38 = vst.msk [vmem:[#allocation2 + $0x78] sm:$0xff] %vm21, 0.0
    %39 = vst.msk [vmem:[#allocation2 + $0x80] sm:$0xff] %vm21, 0.0
    %40 = vst.msk [vmem:[#allocation2 + $0x88] sm:$0x1] %vm24, 0.0
    %41 = vst.msk [vmem:[#allocation2 + $0x90] sm:$0xff] %vm21, 0.0
    %42 = vst.msk [vmem:[#allocation2 + $0x98] sm:$0xff] %vm21, 0.0
    %43 = vst.msk [vmem:[#allocation2 + $0xa0] sm:$0x1] %vm24, 0.0
    %44 = vst.msk [vmem:[#allocation2 + $0xa8] sm:$0xff] %vm21, 0.0
    %45 = vst.msk [vmem:[#allocation2 + $0xb0] sm:$0xff] %vm21, 0.0
    %46 = vst.msk [vmem:[#allocation2 + $0xb8] sm:$0x1] %vm24, 0.0
    %47 = vst.msk [vmem:[#allocation2 + $0xc0] sm:$0xff] %vm21, 0.0
    %48 = vst.msk [vmem:[#allocation2 + $0xc8] sm:$0xff] %vm21, 0.0
    %49 = vst.msk [vmem:[#allocation2 + $0xd0] sm:$0x1] %vm24, 0.0
    %50 = vst.msk [vmem:[#allocation2 + $0xd8] sm:$0xff] %vm21, 0.0
    %51 = vst.msk [vmem:[#allocation2 + $0xe0] sm:$0xff] %vm21, 0.0
    %52 = vst.msk [vmem:[#allocation2 + $0xe8] sm:$0x1] %vm24, 0.0
    %53 = vst.msk [vmem:[#allocation2 + $0xf0] sm:$0xff] %vm21, 0.0
    %54 = vst.msk [vmem:[#allocation2 + $0xf8] sm:$0xff] %vm21, 0.0
    %55 = vst.msk [vmem:[#allocation2 + $0x100] sm:$0x1] %vm24, 0.0
    %56 = vst.msk [vmem:[#allocation2 + $0x108] sm:$0xff] %vm21, 0.0
    %57 = vst.msk [vmem:[#allocation2 + $0x110] sm:$0xff] %vm21, 0.0
    %58 = vst.msk [vmem:[#allocation2 + $0x118] sm:$0x1] %vm24, 0.0
    %59 = vst.msk [vmem:[#allocation2 + $0x120] sm:$0xff] %vm21, 0.0
    %60 = vst.msk [vmem:[#allocation2 + $0x128] sm:$0xff] %vm21, 0.0
    %61 = vst.msk [vmem:[#allocation2 + $0x130] sm:$0x1] %vm24, 0.0
    %62 = vst.msk [vmem:[#allocation2 + $0x138] sm:$0xff] %vm21, 0.0
    %63 = vst.msk [vmem:[#allocation2 + $0x140] sm:$0xff] %vm21, 0.0
    %64 = vst.msk [vmem:[#allocation2 + $0x148] sm:$0x1] %vm24, 0.0
    %65 = vst.msk [vmem:[#allocation2 + $0x150] sm:$0xff] %vm21, 0.0
    %66 = vst.msk [vmem:[#allocation2 + $0x158] sm:$0xff] %vm21, 0.0
    %67 = vst.msk [vmem:[#allocation2 + $0x160] sm:$0x1] %vm24, 0.0
    %68 = vst.msk [vmem:[#allocation2 + $0x168] sm:$0xff] %vm21, 0.0
    %69 = vst.msk [vmem:[#allocation2 + $0x170] sm:$0xff] %vm21, 0.0
    %70 = vst.msk [vmem:[#allocation2 + $0x178] sm:$0x1] %vm24, 0.0
    %71 = vst.msk [vmem:[#allocation2 + $0x180] sm:$0xff] %vm21, 0.0
    %72 = vst.msk [vmem:[#allocation2 + $0x188] sm:$0xff] %vm21, 0.0
    %73 = vst.msk [vmem:[#allocation2 + $0x190] sm:$0x1] %vm24, 0.0
    %74 = vst.msk [vmem:[#allocation2 + $0x198] sm:$0xff] %vm21, 0.0
    %75 = vst.msk [vmem:[#allocation2 + $0x1a0] sm:$0xff] %vm21, 0.0
    %76 = vst.msk [vmem:[#allocation2 + $0x1a8] sm:$0x1] %vm24, 0.0
    %77 = vst.msk [vmem:[#allocation2 + $0x1b0] sm:$0xff] %vm21, 0.0
    %78 = vst.msk [vmem:[#allocation2 + $0x1b8] sm:$0xff] %vm21, 0.0
    %79 = vst.msk [vmem:[#allocation2 + $0x1c0] sm:$0x1] %vm24, 0.0
    %80 = vst.msk [vmem:[#allocation2 + $0x1c8] sm:$0xff] %vm21, 0.0
    %81 = vst.msk [vmem:[#allocation2 + $0x1d0] sm:$0xff] %vm21, 0.0
    %82 = vst.msk [vmem:[#allocation2 + $0x1d8] sm:$0x1] %vm24, 0.0
    %v83 = vld [vmem:[%s0] sm:$0xff]
    %v84 = vld [vmem:[%s0 + $0x8] sm:$0xff]
    %v85 = vld [vmem:[%s0 + $0x10] sm:$0xff]
    %v86 = vld [vmem:[%s0 + $0x18] sm:$0xff]
    %v87 = vld [vmem:[%s0 + $0x20] sm:$0xff]
    %v88 = vld [vmem:[%s0 + $0x28] sm:$0xff]
    %v89 = vld [vmem:[%s0 + $0x30] sm:$0xff]
    %v90 = vld [vmem:[%s0 + $0x38] sm:$0xff]
    %v91 = vld [vmem:[%s0 + $0x40] sm:$0xff]
    %v92 = vld [vmem:[%s0 + $0x48] sm:$0xff]
    %v93 = vld [vmem:[%s0 + $0x50] sm:$0xff]
    %v94 = vld [vmem:[%s0 + $0x58] sm:$0xff]
    %v95 = vld [vmem:[%s0 + $0x60] sm:$0xff]
    %v96 = vld [vmem:[%s0 + $0x68] sm:$0xff]
    %v97 = vld [vmem:[%s0 + $0x70] sm:$0xff]
    %v98 = vld [vmem:[%s0 + $0x78] sm:$0xff]
    %s99 = scalar_lea.vmem [#allocation2], 24
    %100 = vst.msk [vmem:[%s99 + $0x8] sm:$0xff] %vm21, %v83
    %101 = vst.msk [vmem:[%s99 + $0x20] sm:$0xff] %vm21, %v84
    %102 = vst.msk [vmem:[%s99 + $0x38] sm:$0xff] %vm21, %v85
    %103 = vst.msk [vmem:[%s99 + $0x50] sm:$0xff] %vm21, %v86
    %104 = vst.msk [vmem:[%s99 + $0x68] sm:$0xff] %vm21, %v87
    %105 = vst.msk [vmem:[%s99 + $0x80] sm:$0xff] %vm21, %v88
    %106 = vst.msk [vmem:[%s99 + $0x98] sm:$0xff] %vm21, %v89
    %107 = vst.msk [vmem:[%s99 + $0xb0] sm:$0xff] %vm21, %v90
    %108 = vst.msk [vmem:[%s99 + $0xf8] sm:$0xff] %vm21, %v91
    %109 = vst.msk [vmem:[%s99 + $0x110] sm:$0xff] %vm21, %v92
    %110 = vst.msk [vmem:[%s99 + $0x128] sm:$0xff] %vm21, %v93
    %111 = vst.msk [vmem:[%s99 + $0x140] sm:$0xff] %vm21, %v94
    %112 = vst.msk [vmem:[%s99 + $0x158] sm:$0xff] %vm21, %v95
    %113 = vst.msk [vmem:[%s99 + $0x170] sm:$0xff] %vm21, %v96
    %114 = vst.msk [vmem:[%s99 + $0x188] sm:$0xff] %vm21, %v97
    %115 = vst.msk [vmem:[%s99 + $0x1a0] sm:$0xff] %vm21, %v98
    %v116 = vld [vmem:[#allocation2 + $0x7] sm:$0xff]
    %v117 = vld [vmem:[#allocation2 + $0x1f] sm:$0xff]
    %v118 = vld [vmem:[#allocation2 + $0x37] sm:$0xff]
    %v119 = vld [vmem:[#allocation2 + $0x4f] sm:$0xff]
    %v120 = vld [vmem:[#allocation2 + $0x67] sm:$0xff]
    %v121 = vld [vmem:[#allocation2 + $0x7f] sm:$0xff]
    %v122 = vld [vmem:[#allocation2 + $0x97] sm:$0xff]
    %v123 = vld [vmem:[#allocation2 + $0xaf] sm:$0xff]
    %v124 = vld [vmem:[#allocation2 + $0xf7] sm:$0xff]
    %v125 = vld [vmem:[#allocation2 + $0x10f] sm:$0xff]
    %v126 = vld [vmem:[#allocation2 + $0x127] sm:$0xff]
    %v127 = vld [vmem:[#allocation2 + $0x13f] sm:$0xff]
    %v128 = vld [vmem:[#allocation2 + $0x157] sm:$0xff]
    %v129 = vld [vmem:[#allocation2 + $0x16f] sm:$0xff]
    %v130 = vld [vmem:[#allocation2 + $0x187] sm:$0xff]
    %v131 = vld [vmem:[#allocation2 + $0x19f] sm:$0xff]
    %v132 = vld [vmem:[%s1] sm:$0xff]
    %v133 = vld [vmem:[%s1 + $0x8] sm:$0xff]
    %v134 = vld [vmem:[#allocation2 + $0x8] sm:$0xff]
    %v135 = vld [vmem:[#allocation2 + $0x20] sm:$0xff]
    %v136 = vld [vmem:[#allocation2 + $0x38] sm:$0xff]
    %v137 = vld [vmem:[#allocation2 + $0x50] sm:$0xff]
    %v138 = vld [vmem:[#allocation2 + $0x68] sm:$0xff]
    %v139 = vld [vmem:[#allocation2 + $0x80] sm:$0xff]
    %v140 = vld [vmem:[#allocation2 + $0x98] sm:$0xff]
    %v141 = vld [vmem:[#allocation2 + $0xb0] sm:$0xff]
    %v142 = vld [vmem:[#allocation2 + $0xf8] sm:$0xff]
    %v143 = vld [vmem:[#allocation2 + $0x110] sm:$0xff]
    %v144 = vld [vmem:[#allocation2 + $0x128] sm:$0xff]
    %v145 = vld [vmem:[#allocation2 + $0x140] sm:$0xff]
    %v146 = vld [vmem:[#allocation2 + $0x158] sm:$0xff]
    %v147 = vld [vmem:[#allocation2 + $0x170] sm:$0xff]
    %v148 = vld [vmem:[#allocation2 + $0x188] sm:$0xff]
    %v149 = vld [vmem:[#allocation2 + $0x1a0] sm:$0xff]
    %s150 = scalar_lea.vmem %s1, 16
    %v151 = vld [vmem:[%s150] sm:$0xff]
    %v152 = vld [vmem:[%s150 + $0x8] sm:$0xff]
    %v154 = vsel %vm21, %v134, 0
    %v157 = vsel %vm21, %v135, 0
    %v160 = vsel %vm21, %v136, 0
    %v163 = vsel %vm21, %v137, 0
    %v166 = vsel %vm21, %v138, 0
    %v169 = vsel %vm21, %v139, 0
    %v172 = vsel %vm21, %v140, 0
    %v175 = vsel %vm21, %v141, 0
    %v178 = vsel %vm21, %v142, 0
    %v181 = vsel %vm21, %v143, 0
    %v184 = vsel %vm21, %v144, 0
    %v187 = vsel %vm21, %v145, 0
    %v190 = vsel %vm21, %v146, 0
    %v193 = vsel %vm21, %v147, 0
    %v196 = vsel %vm21, %v148, 0
    %v199 = vsel %vm21, %v149, 0
    %201 = vmatprep.subr.mxu0 0.0
    %202 = vmatpush1.msra.mxu0 %v151
    %203 = vmatprep.subr.mxu0 0.0
    %204 = vmatpush1.msra.mxu0 %v152
    %205 = vmatprep.subr.mxu0 0.0
    %206 = vmatpush1.msra.mxu0 0.0
    %207 = vmatprep.subr.mxu0 0.0
    %208 = vmatpush1.msra.mxu0 0.0
    %209 = vmatprep.subr.mxu0 0.0
    %210 = vmatpush1.msra.mxu0 0.0
    %211 = vmatprep.subr.mxu0 0.0
    %212 = vmatpush1.msra.mxu0 0.0
    %213 = vmatprep.subr.mxu0 0.0
    %214 = vmatpush1.msra.mxu0 0.0
    %215 = vmatprep.subr.mxu0 0.0
    %216 = vmatpush1.msra.mxu0 0.0
    %217 = vmatprep.subr.mxu0 0.0
    %218 = vmatpush1.msra.mxu0 0.0
    %219 = vmatprep.subr.mxu0 0.0
    %220 = vmatpush1.msra.mxu0 0.0
    %221 = vmatprep.subr.mxu0 0.0
    %222 = vmatpush1.msra.mxu0 0.0
    %223 = vmatprep.subr.mxu0 0.0
    %224 = vmatpush1.msra.mxu0 0.0
    %225 = vmatprep.subr.mxu0 0.0
    %226 = vmatpush1.msra.mxu0 0.0
    %227 = vmatprep.subr.mxu0 0.0
    %228 = vmatpush1.msra.mxu0 0.0
    %229 = vmatprep.subr.mxu0 0.0
    %230 = vmatpush1.msra.mxu0 0.0
    %231 = vmatprep.subr.mxu0 0.0
    %232 = vmatpush1.msra.mxu0 0.0
    %233 = vmatprep.subr.mxu0 0.0
    %234 = vmatpush1.msra.mxu0 0.0
    %235 = vmatprep.subr.mxu0 0.0
    %236 = vmatpush1.msra.mxu0 0.0
    %237 = vmatprep.subr.mxu0 0.0
    %238 = vmatpush1.msra.mxu0 0.0
    %239 = vmatprep.subr.mxu0 0.0
    %240 = vmatpush1.msra.mxu0 0.0
    %241 = vmatprep.subr.mxu0 0.0
    %242 = vmatpush1.msra.mxu0 0.0
    %243 = vmatprep.subr.mxu0 0.0
    %244 = vmatpush1.msra.mxu0 0.0
    %245 = vmatprep.subr.mxu0 0.0
    %246 = vmatpush1.msra.mxu0 0.0
    %247 = vmatprep.subr.mxu0 0.0
    %248 = vmatpush1.msra.mxu0 0.0
    %249 = vmatprep.subr.mxu0 0.0
    %250 = vmatpush1.msra.mxu0 0.0
    %251 = vmatprep.subr.mxu0 0.0
    %252 = vmatpush1.msra.mxu0 0.0
    %253 = vmatprep.subr.mxu0 0.0
    %254 = vmatpush1.msra.mxu0 0.0
    %255 = vmatprep.subr.mxu0 0.0
    %256 = vmatpush1.msra.mxu0 0.0
    %257 = vmatprep.subr.mxu0 0.0
    %258 = vmatpush1.msra.mxu0 0.0
    %259 = vmatprep.subr.mxu0 0.0
    %260 = vmatpush1.msra.mxu0 0.0
    %261 = vmatprep.subr.mxu0 0.0
    %262 = vmatpush1.msra.mxu0 0.0
    %263 = vmatprep.subr.mxu0 0.0
    %264 = vmatpush1.msra.mxu0 0.0
    %265 = vmatprep.mubr.f32.mxu0 0.0
    %266 = vmatmul.mubr.f32.gmra.mrb[0].mxu0 %v154
    %v267 = vpop.f32.mrb[0].mxu0
    %v268 = vadd.f32 0.0, %v267
    %v269 = vpop.f32.mrb[0].mxu0
    %270 = vmatprep.mubr.f32.mxu0 0.0
    %271 = vmatmul.mubr.f32.gmra.mrb[0].mxu0 %v157
    %v272 = vpop.f32.mrb[0].mxu0
    %v273 = vadd.f32 0.0, %v272
    %v274 = vpop.f32.mrb[0].mxu0
    %275 = vmatprep.mubr.f32.mxu0 0.0
    %276 = vmatmul.mubr.f32.gmra.mrb[0].mxu0 %v160
    %v277 = vpop.f32.mrb[0].mxu0
    %v278 = vadd.f32 0.0, %v277
    %v279 = vpop.f32.mrb[0].mxu0
    %280 = vmatprep.mubr.f32.mxu0 0.0
    %281 = vmatmul.mubr.f32.gmra.mrb[0].mxu0 %v163
    %v282 = vpop.f32.mrb[0].mxu0
    %v283 = vadd.f32 0.0, %v282
    %v284 = vpop.f32.mrb[0].mxu0
    %285 = vmatprep.mubr.f32.mxu0 0.0
    %286 = vmatmul.mubr.f32.gmra.mrb[0].mxu0 %v166
    %v287 = vpop.f32.mrb[0].mxu0
    %v288 = vadd.f32 0.0, %v287
    %v289 = vpop.f32.mrb[0].mxu0
    %290 = vmatprep.mubr.f32.mxu0 0.0
    %291 = vmatmul.mubr.f32.gmra.mrb[0].mxu0 %v169
    %v292 = vpop.f32.mrb[0].mxu0
    %v293 = vadd.f32 0.0, %v292
    %v294 = vpop.f32.mrb[0].mxu0
    %295 = vmatprep.mubr.f32.mxu0 0.0
    %296 = vmatmul.mubr.f32.gmra.mrb[0].mxu0 %v172
    %v297 = vpop.f32.mrb[0].mxu0
    %v298 = vadd.f32 0.0, %v297
    %v299 = vpop.f32.mrb[0].mxu0
    %300 = vmatprep.mubr.f32.mxu0 0.0
    %301 = vmatmul.mubr.f32.gmra.mrb[0].mxu0 %v175
    %v302 = vpop.f32.mrb[0].mxu0
    %v303 = vadd.f32 0.0, %v302
    %v304 = vpop.f32.mrb[0].mxu0
    %305 = vmatprep.mubr.f32.mxu0 0.0
    %306 = vmatmul.mubr.f32.gmra.mrb[0].mxu0 %v178
    %v307 = vpop.f32.mrb[0].mxu0
    %v308 = vadd.f32 0.0, %v307
    %v309 = vpop.f32.mrb[0].mxu0
    %310 = vmatprep.mubr.f32.mxu0 0.0
    %311 = vmatmul.mubr.f32.gmra.mrb[0].mxu0 %v181
    %v312 = vpop.f32.mrb[0].mxu0
    %v313 = vadd.f32 0.0, %v312
    %v314 = vpop.f32.mrb[0].mxu0
    %315 = vmatprep.mubr.f32.mxu0 0.0
    %316 = vmatmul.mubr.f32.gmra.mrb[0].mxu0 %v184
    %v317 = vpop.f32.mrb[0].mxu0
    %v318 = vadd.f32 0.0, %v317
    %v319 = vpop.f32.mrb[0].mxu0
    %320 = vmatprep.mubr.f32.mxu0 0.0
    %321 = vmatmul.mubr.f32.gmra.mrb[0].mxu0 %v187
    %v322 = vpop.f32.mrb[0].mxu0
    %v323 = vadd.f32 0.0, %v322
    %v324 = vpop.f32.mrb[0].mxu0
    %325 = vmatprep.mubr.f32.mxu0 0.0
    %326 = vmatmul.mubr.f32.gmra.mrb[0].mxu0 %v190
    %v327 = vpop.f32.mrb[0].mxu0
    %v328 = vadd.f32 0.0, %v327
    %v329 = vpop.f32.mrb[0].mxu0
    %330 = vmatprep.mubr.f32.mxu0 0.0
    %331 = vmatmul.mubr.f32.gmra.mrb[0].mxu0 %v193
    %v332 = vpop.f32.mrb[0].mxu0
    %v333 = vadd.f32 0.0, %v332
    %v334 = vpop.f32.mrb[0].mxu0
    %335 = vmatprep.mubr.f32.mxu0 0.0
    %336 = vmatmul.mubr.f32.gmra.mrb[0].mxu0 %v196
    %v337 = vpop.f32.mrb[0].mxu0
    %v338 = vadd.f32 0.0, %v337
    %v339 = vpop.f32.mrb[0].mxu0
    %340 = vmatprep.mubr.f32.mxu0 0.0
    %341 = vmatmul.mubr.f32.gmra.mrb[0].mxu0 %v199
    %v342 = vpop.f32.mrb[0].mxu0
    %v343 = vadd.f32 0.0, %v342
    %v344 = vpop.f32.mrb[0].mxu0
    %345 = vdwg.mxu0
    %v347 = vsel %vm21, %v116, 0
    %v350 = vsel %vm21, %v117, 0
    %v353 = vsel %vm21, %v118, 0
    %v356 = vsel %vm21, %v119, 0
    %v359 = vsel %vm21, %v120, 0
    %v362 = vsel %vm21, %v121, 0
    %v365 = vsel %vm21, %v122, 0
    %v368 = vsel %vm21, %v123, 0
    %v371 = vsel %vm21, %v124, 0
    %v374 = vsel %vm21, %v125, 0
    %v377 = vsel %vm21, %v126, 0
    %v380 = vsel %vm21, %v127, 0
    %v383 = vsel %vm21, %v128, 0
    %v386 = vsel %vm21, %v129, 0
    %v389 = vsel %vm21, %v130, 0
    %v392 = vsel %vm21, %v131, 0
    %394 = vmatprep.subr.mxu0 0.0
    %395 = vmatpush1.msra.mxu0 %v132
    %396 = vmatprep.subr.mxu0 0.0
    %397 = vmatpush1.msra.mxu0 %v133
    %398 = vmatprep.subr.mxu0 0.0
    %399 = vmatpush1.msra.mxu0 0.0
    %400 = vmatprep.subr.mxu0 0.0
    %401 = vmatpush1.msra.mxu0 0.0
    %402 = vmatprep.subr.mxu0 0.0
    %403 = vmatpush1.msra.mxu0 0.0
    %404 = vmatprep.subr.mxu0 0.0
    %405 = vmatpush1.msra.mxu0 0.0
    %406 = vmatprep.subr.mxu0 0.0
    %407 = vmatpush1.msra.mxu0 0.0
    %408 = vmatprep.subr.mxu0 0.0
    %409 = vmatpush1.msra.mxu0 0.0
    %410 = vmatprep.subr.mxu0 0.0
    %411 = vmatpush1.msra.mxu0 0.0
    %412 = vmatprep.subr.mxu0 0.0
    %413 = vmatpush1.msra.mxu0 0.0
    %414 = vmatprep.subr.mxu0 0.0
    %415 = vmatpush1.msra.mxu0 0.0
    %416 = vmatprep.subr.mxu0 0.0
    %417 = vmatpush1.msra.mxu0 0.0
    %418 = vmatprep.subr.mxu0 0.0
    %419 = vmatpush1.msra.mxu0 0.0
    %420 = vmatprep.subr.mxu0 0.0
    %421 = vmatpush1.msra.mxu0 0.0
    %422 = vmatprep.subr.mxu0 0.0
    %423 = vmatpush1.msra.mxu0 0.0
    %424 = vmatprep.subr.mxu0 0.0
    %425 = vmatpush1.msra.mxu0 0.0
    %426 = vmatprep.subr.mxu0 0.0
    %427 = vmatpush1.msra.mxu0 0.0
    %428 = vmatprep.subr.mxu0 0.0
    %429 = vmatpush1.msra.mxu0 0.0
    %430 = vmatprep.subr.mxu0 0.0
    %431 = vmatpush1.msra.mxu0 0.0
    %432 = vmatprep.subr.mxu0 0.0
    %433 = vmatpush1.msra.mxu0 0.0
    %434 = vmatprep.subr.mxu0 0.0
    %435 = vmatpush1.msra.mxu0 0.0
    %436 = vmatprep.subr.mxu0 0.0
    %437 = vmatpush1.msra.mxu0 0.0
    %438 = vmatprep.subr.mxu0 0.0
    %439 = vmatpush1.msra.mxu0 0.0
    %440 = vmatprep.subr.mxu0 0.0
    %441 = vmatpush1.msra.mxu0 0.0
    %442 = vmatprep.subr.mxu0 0.0
    %443 = vmatpush1.msra.mxu0 0.0
    %444 = vmatprep.subr.mxu0 0.0
    %445 = vmatpush1.msra.mxu0 0.0
    %446 = vmatprep.subr.mxu0 0.0
    %447 = vmatpush1.msra.mxu0 0.0
    %448 = vmatprep.subr.mxu0 0.0
    %449 = vmatpush1.msra.mxu0 0.0
    %450 = vmatprep.subr.mxu0 0.0
    %451 = vmatpush1.msra.mxu0 0.0
    %452 = vmatprep.subr.mxu0 0.0
    %453 = vmatpush1.msra.mxu0 0.0
    %454 = vmatprep.subr.mxu0 0.0
    %455 = vmatpush1.msra.mxu0 0.0
    %456 = vmatprep.subr.mxu0 0.0
    %457 = vmatpush1.msra.mxu0 0.0
    %458 = vmatprep.mubr.f32.mxu0 0.0
    %459 = vmatmul.mubr.f32.gmra.mrb[0].mxu0 %v347
    %v460 = vpop.f32.mrb[0].mxu0
    %v461 = vadd.f32 %v268, %v460
    %v462 = vpop.f32.mrb[0].mxu0
    %463 = vmatprep.mubr.f32.mxu0 0.0
    %464 = vmatmul.mubr.f32.gmra.mrb[0].mxu0 %v350
    %v465 = vpop.f32.mrb[0].mxu0
    %v466 = vadd.f32 %v273, %v465
    %v467 = vpop.f32.mrb[0].mxu0
    %468 = vmatprep.mubr.f32.mxu0 0.0
    %469 = vmatmul.mubr.f32.gmra.mrb[0].mxu0 %v353
    %v470 = vpop.f32.mrb[0].mxu0
    %v471 = vadd.f32 %v278, %v470
    %v472 = vpop.f32.mrb[0].mxu0
    %473 = vmatprep.mubr.f32.mxu0 0.0
    %474 = vmatmul.mubr.f32.gmra.mrb[0].mxu0 %v356
    %v475 = vpop.f32.mrb[0].mxu0
    %v476 = vadd.f32 %v283, %v475
    %v477 = vpop.f32.mrb[0].mxu0
    %478 = vmatprep.mubr.f32.mxu0 0.0
    %479 = vmatmul.mubr.f32.gmra.mrb[0].mxu0 %v359
    %v480 = vpop.f32.mrb[0].mxu0
    %v481 = vadd.f32 %v288, %v480
    %v482 = vpop.f32.mrb[0].mxu0
    %483 = vmatprep.mubr.f32.mxu0 0.0
    %484 = vmatmul.mubr.f32.gmra.mrb[0].mxu0 %v362
    %v485 = vpop.f32.mrb[0].mxu0
    %v486 = vadd.f32 %v293, %v485
    %v487 = vpop.f32.mrb[0].mxu0
    %488 = vmatprep.mubr.f32.mxu0 0.0
    %489 = vmatmul.mubr.f32.gmra.mrb[0].mxu0 %v365
    %v490 = vpop.f32.mrb[0].mxu0
    %v491 = vadd.f32 %v298, %v490
    %v492 = vpop.f32.mrb[0].mxu0
    %493 = vmatprep.mubr.f32.mxu0 0.0
    %494 = vmatmul.mubr.f32.gmra.mrb[0].mxu0 %v368
    %v495 = vpop.f32.mrb[0].mxu0
    %v496 = vadd.f32 %v303, %v495
    %v497 = vpop.f32.mrb[0].mxu0
    %498 = vmatprep.mubr.f32.mxu0 0.0
    %499 = vmatmul.mubr.f32.gmra.mrb[0].mxu0 %v371
    %v500 = vpop.f32.mrb[0].mxu0
    %v501 = vadd.f32 %v308, %v500
    %v502 = vpop.f32.mrb[0].mxu0
    %503 = vmatprep.mubr.f32.mxu0 0.0
    %504 = vmatmul.mubr.f32.gmra.mrb[0].mxu0 %v374
    %v505 = vpop.f32.mrb[0].mxu0
    %v506 = vadd.f32 %v313, %v505
    %v507 = vpop.f32.mrb[0].mxu0
    %508 = vmatprep.mubr.f32.mxu0 0.0
    %509 = vmatmul.mubr.f32.gmra.mrb[0].mxu0 %v377
    %v510 = vpop.f32.mrb[0].mxu0
    %v511 = vadd.f32 %v318, %v510
    %v512 = vpop.f32.mrb[0].mxu0
    %513 = vmatprep.mubr.f32.mxu0 0.0
    %514 = vmatmul.mubr.f32.gmra.mrb[0].mxu0 %v380
    %v515 = vpop.f32.mrb[0].mxu0
    %v516 = vadd.f32 %v323, %v515
    %v517 = vpop.f32.mrb[0].mxu0
    %518 = vmatprep.mubr.f32.mxu0 0.0
    %519 = vmatmul.mubr.f32.gmra.mrb[0].mxu0 %v383
    %v520 = vpop.f32.mrb[0].mxu0
    %v521 = vadd.f32 %v328, %v520
    %v522 = vpop.f32.mrb[0].mxu0
    %523 = vmatprep.mubr.f32.mxu0 0.0
    %524 = vmatmul.mubr.f32.gmra.mrb[0].mxu0 %v386
    %v525 = vpop.f32.mrb[0].mxu0
    %v526 = vadd.f32 %v333, %v525
    %v527 = vpop.f32.mrb[0].mxu0
    %528 = vmatprep.mubr.f32.mxu0 0.0
    %529 = vmatmul.mubr.f32.gmra.mrb[0].mxu0 %v389
    %v530 = vpop.f32.mrb[0].mxu0
    %v531 = vadd.f32 %v338, %v530
    %v532 = vpop.f32.mrb[0].mxu0
    %533 = vmatprep.mubr.f32.mxu0 0.0
    %534 = vmatmul.mubr.f32.gmra.mrb[0].mxu0 %v392
    %v535 = vpop.f32.mrb[0].mxu0
    %v536 = vadd.f32 %v343, %v535
    %v537 = vpop.f32.mrb[0].mxu0
    %538 = vdwg.mxu0
    %v539 = vld [vmem:[#allocation2 + $0x9] sm:$0xff]
    %v540 = vld [vmem:[#allocation2 + $0x21] sm:$0xff]
    %v541 = vld [vmem:[#allocation2 + $0x39] sm:$0xff]
    %v542 = vld [vmem:[#allocation2 + $0x51] sm:$0xff]
    %v543 = vld [vmem:[#allocation2 + $0x69] sm:$0xff]
    %v544 = vld [vmem:[#allocation2 + $0x81] sm:$0xff]
    %v545 = vld [vmem:[#allocation2 + $0x99] sm:$0xff]
    %v546 = vld [vmem:[#allocation2 + $0xb1] sm:$0xff]
    %v547 = vld [vmem:[#allocation2 + $0xf9] sm:$0xff]
    %v548 = vld [vmem:[#allocation2 + $0x111] sm:$0xff]
    %v549 = vld [vmem:[#allocation2 + $0x129] sm:$0xff]
    %v550 = vld [vmem:[#allocation2 + $0x141] sm:$0xff]
    %v551 = vld [vmem:[#allocation2 + $0x159] sm:$0xff]
    %v552 = vld [vmem:[#allocation2 + $0x171] sm:$0xff]
    %v553 = vld [vmem:[#allocation2 + $0x189] sm:$0xff]
    %v554 = vld [vmem:[#allocation2 + $0x1a1] sm:$0xff]
    %s555 = scalar_lea.vmem %s1, 32
    %v556 = vld [vmem:[%s555] sm:$0xff]
    %v557 = vld [vmem:[%s555 + $0x8] sm:$0xff]
    %v559 = vsel %vm21, %v539, 0
    %v562 = vsel %vm21, %v540, 0
    %v565 = vsel %vm21, %v541, 0
    %v568 = vsel %vm21, %v542, 0
    %v571 = vsel %vm21, %v543, 0
    %v574 = vsel %vm21, %v544, 0
    %v577 = vsel %vm21, %v545, 0
    %v580 = vsel %vm21, %v546, 0
    %v583 = vsel %vm21, %v547, 0
    %v586 = vsel %vm21, %v548, 0
    %v589 = vsel %vm21, %v549, 0
    %v592 = vsel %vm21, %v550, 0
    %v595 = vsel %vm21, %v551, 0
    %v598 = vsel %vm21, %v552, 0
    %v601 = vsel %vm21, %v553, 0
    %v604 = vsel %vm21, %v554, 0
    %606 = vmatprep.subr.mxu0 0.0
    %607 = vmatpush1.msra.mxu0 %v556
    %608 = vmatprep.subr.mxu0 0.0
    %609 = vmatpush1.msra.mxu0 %v557
    %610 = vmatprep.subr.mxu0 0.0
    %611 = vmatpush1.msra.mxu0 0.0
    %612 = vmatprep.subr.mxu0 0.0
    %613 = vmatpush1.msra.mxu0 0.0
    %614 = vmatprep.subr.mxu0 0.0
    %615 = vmatpush1.msra.mxu0 0.0
    %616 = vmatprep.subr.mxu0 0.0
    %617 = vmatpush1.msra.mxu0 0.0
    %618 = vmatprep.subr.mxu0 0.0
    %619 = vmatpush1.msra.mxu0 0.0
    %620 = vmatprep.subr.mxu0 0.0
    %621 = vmatpush1.msra.mxu0 0.0
    %622 = vmatprep.subr.mxu0 0.0
    %623 = vmatpush1.msra.mxu0 0.0
    %624 = vmatprep.subr.mxu0 0.0
    %625 = vmatpush1.msra.mxu0 0.0
    %626 = vmatprep.subr.mxu0 0.0
    %627 = vmatpush1.msra.mxu0 0.0
    %628 = vmatprep.subr.mxu0 0.0
    %629 = vmatpush1.msra.mxu0 0.0
    %630 = vmatprep.subr.mxu0 0.0
    %631 = vmatpush1.msra.mxu0 0.0
    %632 = vmatprep.subr.mxu0 0.0
    %633 = vmatpush1.msra.mxu0 0.0
    %634 = vmatprep.subr.mxu0 0.0
    %635 = vmatpush1.msra.mxu0 0.0
    %636 = vmatprep.subr.mxu0 0.0
    %637 = vmatpush1.msra.mxu0 0.0
    %638 = vmatprep.subr.mxu0 0.0
    %639 = vmatpush1.msra.mxu0 0.0
    %640 = vmatprep.subr.mxu0 0.0
    %641 = vmatpush1.msra.mxu0 0.0
    %642 = vmatprep.subr.mxu0 0.0
    %643 = vmatpush1.msra.mxu0 0.0
    %644 = vmatprep.subr.mxu0 0.0
    %645 = vmatpush1.msra.mxu0 0.0
    %646 = vmatprep.subr.mxu0 0.0
    %647 = vmatpush1.msra.mxu0 0.0
    %648 = vmatprep.subr.mxu0 0.0
    %649 = vmatpush1.msra.mxu0 0.0
    %650 = vmatprep.subr.mxu0 0.0
    %651 = vmatpush1.msra.mxu0 0.0
    %652 = vmatprep.subr.mxu0 0.0
    %653 = vmatpush1.msra.mxu0 0.0
    %654 = vmatprep.subr.mxu0 0.0
    %655 = vmatpush1.msra.mxu0 0.0
    %656 = vmatprep.subr.mxu0 0.0
    %657 = vmatpush1.msra.mxu0 0.0
    %658 = vmatprep.subr.mxu0 0.0
    %659 = vmatpush1.msra.mxu0 0.0
    %660 = vmatprep.subr.mxu0 0.0
    %661 = vmatpush1.msra.mxu0 0.0
    %662 = vmatprep.subr.mxu0 0.0
    %663 = vmatpush1.msra.mxu0 0.0
    %664 = vmatprep.subr.mxu0 0.0
    %665 = vmatpush1.msra.mxu0 0.0
    %666 = vmatprep.subr.mxu0 0.0
    %667 = vmatpush1.msra.mxu0 0.0
    %668 = vmatprep.subr.mxu0 0.0
    %669 = vmatpush1.msra.mxu0 0.0
    %670 = vmatprep.mubr.f32.mxu0 0.0
    %671 = vmatmul.mubr.f32.gmra.mrb[0].mxu0 %v559
    %v672 = vpop.f32.mrb[0].mxu0
    %v673 = vadd.f32 0.0, %v672
    %v674 = vpop.f32.mrb[0].mxu0
    %675 = vmatprep.mubr.f32.mxu0 0.0
    %676 = vmatmul.mubr.f32.gmra.mrb[0].mxu0 %v562
    %v677 = vpop.f32.mrb[0].mxu0
    %v678 = vadd.f32 0.0, %v677
    %v679 = vpop.f32.mrb[0].mxu0
    %680 = vmatprep.mubr.f32.mxu0 0.0
    %681 = vmatmul.mubr.f32.gmra.mrb[0].mxu0 %v565
    %v682 = vpop.f32.mrb[0].mxu0
    %v683 = vadd.f32 0.0, %v682
    %v684 = vpop.f32.mrb[0].mxu0
    %685 = vmatprep.mubr.f32.mxu0 0.0
    %686 = vmatmul.mubr.f32.gmra.mrb[0].mxu0 %v568
    %v687 = vpop.f32.mrb[0].mxu0
    %v688 = vadd.f32 0.0, %v687
    %v689 = vpop.f32.mrb[0].mxu0
    %690 = vmatprep.mubr.f32.mxu0 0.0
    %691 = vmatmul.mubr.f32.gmra.mrb[0].mxu0 %v571
    %v692 = vpop.f32.mrb[0].mxu0
    %v693 = vadd.f32 0.0, %v692
    %v694 = vpop.f32.mrb[0].mxu0
    %695 = vmatprep.mubr.f32.mxu0 0.0
    %696 = vmatmul.mubr.f32.gmra.mrb[0].mxu0 %v574
    %v697 = vpop.f32.mrb[0].mxu0
    %v698 = vadd.f32 0.0, %v697
    %v699 = vpop.f32.mrb[0].mxu0
    %700 = vmatprep.mubr.f32.mxu0 0.0
    %701 = vmatmul.mubr.f32.gmra.mrb[0].mxu0 %v577
    %v702 = vpop.f32.mrb[0].mxu0
    %v703 = vadd.f32 0.0, %v702
    %v704 = vpop.f32.mrb[0].mxu0
    %705 = vmatprep.mubr.f32.mxu0 0.0
    %706 = vmatmul.mubr.f32.gmra.mrb[0].mxu0 %v580
    %v707 = vpop.f32.mrb[0].mxu0
    %v708 = vadd.f32 0.0, %v707
    %v709 = vpop.f32.mrb[0].mxu0
    %710 = vmatprep.mubr.f32.mxu0 0.0
    %711 = vmatmul.mubr.f32.gmra.mrb[0].mxu0 %v583
    %v712 = vpop.f32.mrb[0].mxu0
    %v713 = vadd.f32 0.0, %v712
    %v714 = vpop.f32.mrb[0].mxu0
    %715 = vmatprep.mubr.f32.mxu0 0.0
    %716 = vmatmul.mubr.f32.gmra.mrb[0].mxu0 %v586
    %v717 = vpop.f32.mrb[0].mxu0
    %v718 = vadd.f32 0.0, %v717
    %v719 = vpop.f32.mrb[0].mxu0
    %720 = vmatprep.mubr.f32.mxu0 0.0
    %721 = vmatmul.mubr.f32.gmra.mrb[0].mxu0 %v589
    %v722 = vpop.f32.mrb[0].mxu0
    %v723 = vadd.f32 0.0, %v722
    %v724 = vpop.f32.mrb[0].mxu0
    %725 = vmatprep.mubr.f32.mxu0 0.0
    %726 = vmatmul.mubr.f32.gmra.mrb[0].mxu0 %v592
    %v727 = vpop.f32.mrb[0].mxu0
    %v728 = vadd.f32 0.0, %v727
    %v729 = vpop.f32.mrb[0].mxu0
    %730 = vmatprep.mubr.f32.mxu0 0.0
    %731 = vmatmul.mubr.f32.gmra.mrb[0].mxu0 %v595
    %v732 = vpop.f32.mrb[0].mxu0
    %v733 = vadd.f32 0.0, %v732
    %v734 = vpop.f32.mrb[0].mxu0
    %735 = vmatprep.mubr.f32.mxu0 0.0
    %736 = vmatmul.mubr.f32.gmra.mrb[0].mxu0 %v598
    %v737 = vpop.f32.mrb[0].mxu0
    %v738 = vadd.f32 0.0, %v737
    %v739 = vpop.f32.mrb[0].mxu0
    %740 = vmatprep.mubr.f32.mxu0 0.0
    %741 = vmatmul.mubr.f32.gmra.mrb[0].mxu0 %v601
    %v742 = vpop.f32.mrb[0].mxu0
    %v743 = vadd.f32 0.0, %v742
    %v744 = vpop.f32.mrb[0].mxu0
    %745 = vmatprep.mubr.f32.mxu0 0.0
    %746 = vmatmul.mubr.f32.gmra.mrb[0].mxu0 %v604
    %v747 = vpop.f32.mrb[0].mxu0
    %v748 = vadd.f32 0.0, %v747
    %v749 = vpop.f32.mrb[0].mxu0
    %750 = vdwg.mxu0
    %v751 = vadd.f32 %v461, %v673
    %v752 = vadd.f32 %v466, %v678
    %v753 = vadd.f32 %v471, %v683
    %v754 = vadd.f32 %v476, %v688
    %v755 = vadd.f32 %v481, %v693
    %v756 = vadd.f32 %v486, %v698
    %v757 = vadd.f32 %v491, %v703
    %v758 = vadd.f32 %v496, %v708
    %v759 = vadd.f32 %v501, %v713
    %v760 = vadd.f32 %v506, %v718
    %v761 = vadd.f32 %v511, %v723
    %v762 = vadd.f32 %v516, %v728
    %v763 = vadd.f32 %v521, %v733
    %v764 = vadd.f32 %v526, %v738
    %v765 = vadd.f32 %v531, %v743
    %v766 = vadd.f32 %v536, %v748
    %v767 = vld [vmem:[%s99 + $0x7] sm:$0xff]
    %v768 = vld [vmem:[%s99 + $0x1f] sm:$0xff]
    %v769 = vld [vmem:[%s99 + $0x37] sm:$0xff]
    %v770 = vld [vmem:[%s99 + $0x4f] sm:$0xff]
    %v771 = vld [vmem:[%s99 + $0x67] sm:$0xff]
    %v772 = vld [vmem:[%s99 + $0x7f] sm:$0xff]
    %v773 = vld [vmem:[%s99 + $0x97] sm:$0xff]
    %v774 = vld [vmem:[%s99 + $0xaf] sm:$0xff]
    %v775 = vld [vmem:[%s99 + $0xf7] sm:$0xff]
    %v776 = vld [vmem:[%s99 + $0x10f] sm:$0xff]
    %v777 = vld [vmem:[%s99 + $0x127] sm:$0xff]
    %v778 = vld [vmem:[%s99 + $0x13f] sm:$0xff]
    %v779 = vld [vmem:[%s99 + $0x157] sm:$0xff]
    %v780 = vld [vmem:[%s99 + $0x16f] sm:$0xff]
    %v781 = vld [vmem:[%s99 + $0x187] sm:$0xff]
    %v782 = vld [vmem:[%s99 + $0x19f] sm:$0xff]
    %s783 = scalar_lea.vmem %s1, 48
    %v784 = vld [vmem:[%s783] sm:$0xff]
    %v785 = vld [vmem:[%s783 + $0x8] sm:$0xff]
    %v787 = vsel %vm21, %v767, 0
    %v790 = vsel %vm21, %v768, 0
    %v793 = vsel %vm21, %v769, 0
    %v796 = vsel %vm21, %v770, 0
    %v799 = vsel %vm21, %v771, 0
    %v802 = vsel %vm21, %v772, 0
    %v805 = vsel %vm21, %v773, 0
    %v808 = vsel %vm21, %v774, 0
    %v811 = vsel %vm21, %v775, 0
    %v814 = vsel %vm21, %v776, 0
    %v817 = vsel %vm21, %v777, 0
    %v820 = vsel %vm21, %v778, 0
    %v823 = vsel %vm21, %v779, 0
    %v826 = vsel %vm21, %v780, 0
    %v829 = vsel %vm21, %v781, 0
    %v832 = vsel %vm21, %v782, 0
    %834 = vmatprep.subr.mxu0 0.0
    %835 = vmatpush1.msra.mxu0 %v784
    %836 = vmatprep.subr.mxu0 0.0
    %837 = vmatpush1.msra.mxu0 %v785
    %838 = vmatprep.subr.mxu0 0.0
    %839 = vmatpush1.msra.mxu0 0.0
    %840 = vmatprep.subr.mxu0 0.0
    %841 = vmatpush1.msra.mxu0 0.0
    %842 = vmatprep.subr.mxu0 0.0
    %843 = vmatpush1.msra.mxu0 0.0
    %844 = vmatprep.subr.mxu0 0.0
    %845 = vmatpush1.msra.mxu0 0.0
    %846 = vmatprep.subr.mxu0 0.0
    %847 = vmatpush1.msra.mxu0 0.0
    %848 = vmatprep.subr.mxu0 0.0
    %849 = vmatpush1.msra.mxu0 0.0
    %850 = vmatprep.subr.mxu0 0.0
    %851 = vmatpush1.msra.mxu0 0.0
    %852 = vmatprep.subr.mxu0 0.0
    %853 = vmatpush1.msra.mxu0 0.0
    %854 = vmatprep.subr.mxu0 0.0
    %855 = vmatpush1.msra.mxu0 0.0
    %856 = vmatprep.subr.mxu0 0.0
    %857 = vmatpush1.msra.mxu0 0.0
    %858 = vmatprep.subr.mxu0 0.0
    %859 = vmatpush1.msra.mxu0 0.0
    %860 = vmatprep.subr.mxu0 0.0
    %861 = vmatpush1.msra.mxu0 0.0
    %862 = vmatprep.subr.mxu0 0.0
    %863 = vmatpush1.msra.mxu0 0.0
    %864 = vmatprep.subr.mxu0 0.0
    %865 = vmatpush1.msra.mxu0 0.0
    %866 = vmatprep.subr.mxu0 0.0
    %867 = vmatpush1.msra.mxu0 0.0
    %868 = vmatprep.subr.mxu0 0.0
    %869 = vmatpush1.msra.mxu0 0.0
    %870 = vmatprep.subr.mxu0 0.0
    %871 = vmatpush1.msra.mxu0 0.0
    %872 = vmatprep.subr.mxu0 0.0
    %873 = vmatpush1.msra.mxu0 0.0
    %874 = vmatprep.subr.mxu0 0.0
    %875 = vmatpush1.msra.mxu0 0.0
    %876 = vmatprep.subr.mxu0 0.0
    %877 = vmatpush1.msra.mxu0 0.0
    %878 = vmatprep.subr.mxu0 0.0
    %879 = vmatpush1.msra.mxu0 0.0
    %880 = vmatprep.subr.mxu0 0.0
    %881 = vmatpush1.msra.mxu0 0.0
    %882 = vmatprep.subr.mxu0 0.0
    %883 = vmatpush1.msra.mxu0 0.0
    %884 = vmatprep.subr.mxu0 0.0
    %885 = vmatpush1.msra.mxu0 0.0
    %886 = vmatprep.subr.mxu0 0.0
    %887 = vmatpush1.msra.mxu0 0.0
    %888 = vmatprep.subr.mxu0 0.0
    %889 = vmatpush1.msra.mxu0 0.0
    %890 = vmatprep.subr.mxu0 0.0
    %891 = vmatpush1.msra.mxu0 0.0
    %892 = vmatprep.subr.mxu0 0.0
    %893 = vmatpush1.msra.mxu0 0.0
    %894 = vmatprep.subr.mxu0 0.0
    %895 = vmatpush1.msra.mxu0 0.0
    %896 = vmatprep.subr.mxu0 0.0
    %897 = vmatpush1.msra.mxu0 0.0
    %898 = vmatprep.mubr.f32.mxu0 0.0
    %899 = vmatmul.mubr.f32.gmra.mrb[0].mxu0 %v787
    %v900 = vpop.f32.mrb[0].mxu0
    %v901 = vadd.f32 0.0, %v900
    %v902 = vpop.f32.mrb[0].mxu0
    %903 = vmatprep.mubr.f32.mxu0 0.0
    %904 = vmatmul.mubr.f32.gmra.mrb[0].mxu0 %v790
    %v905 = vpop.f32.mrb[0].mxu0
    %v906 = vadd.f32 0.0, %v905
    %v907 = vpop.f32.mrb[0].mxu0
    %908 = vmatprep.mubr.f32.mxu0 0.0
    %909 = vmatmul.mubr.f32.gmra.mrb[0].mxu0 %v793
    %v910 = vpop.f32.mrb[0].mxu0
    %v911 = vadd.f32 0.0, %v910
    %v912 = vpop.f32.mrb[0].mxu0
    %913 = vmatprep.mubr.f32.mxu0 0.0
    %914 = vmatmul.mubr.f32.gmra.mrb[0].mxu0 %v796
    %v915 = vpop.f32.mrb[0].mxu0
    %v916 = vadd.f32 0.0, %v915
    %v917 = vpop.f32.mrb[0].mxu0
    %918 = vmatprep.mubr.f32.mxu0 0.0
    %919 = vmatmul.mubr.f32.gmra.mrb[0].mxu0 %v799
    %v920 = vpop.f32.mrb[0].mxu0
    %v921 = vadd.f32 0.0, %v920
    %v922 = vpop.f32.mrb[0].mxu0
    %923 = vmatprep.mubr.f32.mxu0 0.0
    %924 = vmatmul.mubr.f32.gmra.mrb[0].mxu0 %v802
    %v925 = vpop.f32.mrb[0].mxu0
    %v926 = vadd.f32 0.0, %v925
    %v927 = vpop.f32.mrb[0].mxu0
    %928 = vmatprep.mubr.f32.mxu0 0.0
    %929 = vmatmul.mubr.f32.gmra.mrb[0].mxu0 %v805
    %v930 = vpop.f32.mrb[0].mxu0
    %v931 = vadd.f32 0.0, %v930
    %v932 = vpop.f32.mrb[0].mxu0
    %933 = vmatprep.mubr.f32.mxu0 0.0
    %934 = vmatmul.mubr.f32.gmra.mrb[0].mxu0 %v808
    %v935 = vpop.f32.mrb[0].mxu0
    %v936 = vadd.f32 0.0, %v935
    %v937 = vpop.f32.mrb[0].mxu0
    %938 = vmatprep.mubr.f32.mxu0 0.0
    %939 = vmatmul.mubr.f32.gmra.mrb[0].mxu0 %v811
    %v940 = vpop.f32.mrb[0].mxu0
    %v941 = vadd.f32 0.0, %v940
    %v942 = vpop.f32.mrb[0].mxu0
    %943 = vmatprep.mubr.f32.mxu0 0.0
    %944 = vmatmul.mubr.f32.gmra.mrb[0].mxu0 %v814
    %v945 = vpop.f32.mrb[0].mxu0
    %v946 = vadd.f32 0.0, %v945
    %v947 = vpop.f32.mrb[0].mxu0
    %948 = vmatprep.mubr.f32.mxu0 0.0
    %949 = vmatmul.mubr.f32.gmra.mrb[0].mxu0 %v817
    %v950 = vpop.f32.mrb[0].mxu0
    %v951 = vadd.f32 0.0, %v950
    %v952 = vpop.f32.mrb[0].mxu0
    %953 = vmatprep.mubr.f32.mxu0 0.0
    %954 = vmatmul.mubr.f32.gmra.mrb[0].mxu0 %v820
    %v955 = vpop.f32.mrb[0].mxu0
    %v956 = vadd.f32 0.0, %v955
    %v957 = vpop.f32.mrb[0].mxu0
    %958 = vmatprep.mubr.f32.mxu0 0.0
    %959 = vmatmul.mubr.f32.gmra.mrb[0].mxu0 %v823
    %v960 = vpop.f32.mrb[0].mxu0
    %v961 = vadd.f32 0.0, %v960
    %v962 = vpop.f32.mrb[0].mxu0
    %963 = vmatprep.mubr.f32.mxu0 0.0
    %964 = vmatmul.mubr.f32.gmra.mrb[0].mxu0 %v826
    %v965 = vpop.f32.mrb[0].mxu0
    %v966 = vadd.f32 0.0, %v965
    %v967 = vpop.f32.mrb[0].mxu0
    %968 = vmatprep.mubr.f32.mxu0 0.0
    %969 = vmatmul.mubr.f32.gmra.mrb[0].mxu0 %v829
    %v970 = vpop.f32.mrb[0].mxu0
    %v971 = vadd.f32 0.0, %v970
    %v972 = vpop.f32.mrb[0].mxu0
    %973 = vmatprep.mubr.f32.mxu0 0.0
    %974 = vmatmul.mubr.f32.gmra.mrb[0].mxu0 %v832
    %v975 = vpop.f32.mrb[0].mxu0
    %v976 = vadd.f32 0.0, %v975
    %v977 = vpop.f32.mrb[0].mxu0
    %978 = vdwg.mxu0
    %v979 = vadd.f32 %v751, %v901
    %v980 = vadd.f32 %v752, %v906
    %v981 = vadd.f32 %v753, %v911
    %v982 = vadd.f32 %v754, %v916
    %v983 = vadd.f32 %v755, %v921
    %v984 = vadd.f32 %v756, %v926
    %v985 = vadd.f32 %v757, %v931
    %v986 = vadd.f32 %v758, %v936
    %v987 = vadd.f32 %v759, %v941
    %v988 = vadd.f32 %v760, %v946
    %v989 = vadd.f32 %v761, %v951
    %v990 = vadd.f32 %v762, %v956
    %v991 = vadd.f32 %v763, %v961
    %v992 = vadd.f32 %v764, %v966
    %v993 = vadd.f32 %v765, %v971
    %v994 = vadd.f32 %v766, %v976
    %v995 = vld [vmem:[%s99 + $0x8] sm:$0xff]
    %v996 = vld [vmem:[%s99 + $0x20] sm:$0xff]
    %v997 = vld [vmem:[%s99 + $0x38] sm:$0xff]
    %v998 = vld [vmem:[%s99 + $0x50] sm:$0xff]
    %v999 = vld [vmem:[%s99 + $0x68] sm:$0xff]
    %v1000 = vld [vmem:[%s99 + $0x80] sm:$0xff]
    %v1001 = vld [vmem:[%s99 + $0x98] sm:$0xff]
    %v1002 = vld [vmem:[%s99 + $0xb0] sm:$0xff]
    %v1003 = vld [vmem:[%s99 + $0xf8] sm:$0xff]
    %v1004 = vld [vmem:[%s99 + $0x110] sm:$0xff]
    %v1005 = vld [vmem:[%s99 + $0x128] sm:$0xff]
    %v1006 = vld [vmem:[%s99 + $0x140] sm:$0xff]
    %v1007 = vld [vmem:[%s99 + $0x158] sm:$0xff]
    %v1008 = vld [vmem:[%s99 + $0x170] sm:$0xff]
    %v1009 = vld [vmem:[%s99 + $0x188] sm:$0xff]
    %v1010 = vld [vmem:[%s99 + $0x1a0] sm:$0xff]
    %s1011 = scalar_lea.vmem %s1, 64
    %v1012 = vld [vmem:[%s1011] sm:$0xff]
    %v1013 = vld [vmem:[%s1011 + $0x8] sm:$0xff]
    %v1015 = vsel %vm21, %v995, 0
    %v1018 = vsel %vm21, %v996, 0
    %v1021 = vsel %vm21, %v997, 0
    %v1024 = vsel %vm21, %v998, 0
    %v1027 = vsel %vm21, %v999, 0
    %v1030 = vsel %vm21, %v1000, 0
    %v1033 = vsel %vm21, %v1001, 0
    %v1036 = vsel %vm21, %v1002, 0
    %v1039 = vsel %vm21, %v1003, 0
    %v1042 = vsel %vm21, %v1004, 0
    %v1045 = vsel %vm21, %v1005, 0
    %v1048 = vsel %vm21, %v1006, 0
    %v1051 = vsel %vm21, %v1007, 0
    %v1054 = vsel %vm21, %v1008, 0
    %v1057 = vsel %vm21, %v1009, 0
    %v1060 = vsel %vm21, %v1010, 0
    %1062 = vmatprep.subr.mxu0 0.0
    %1063 = vmatpush1.msra.mxu0 %v1012
    %1064 = vmatprep.subr.mxu0 0.0
    %1065 = vmatpush1.msra.mxu0 %v1013
    %1066 = vmatprep.subr.mxu0 0.0
    %1067 = vmatpush1.msra.mxu0 0.0
    %1068 = vmatprep.subr.mxu0 0.0
    %1069 = vmatpush1.msra.mxu0 0.0
    %1070 = vmatprep.subr.mxu0 0.0
    %1071 = vmatpush1.msra.mxu0 0.0
    %1072 = vmatprep.subr.mxu0 0.0
    %1073 = vmatpush1.msra.mxu0 0.0
    %1074 = vmatprep.subr.mxu0 0.0
    %1075 = vmatpush1.msra.mxu0 0.0
    %1076 = vmatprep.subr.mxu0 0.0
    %1077 = vmatpush1.msra.mxu0 0.0
    %1078 = vmatprep.subr.mxu0 0.0
    %1079 = vmatpush1.msra.mxu0 0.0
    %1080 = vmatprep.subr.mxu0 0.0
    %1081 = vmatpush1.msra.mxu0 0.0
    %1082 = vmatprep.subr.mxu0 0.0
    %1083 = vmatpush1.msra.mxu0 0.0
    %1084 = vmatprep.subr.mxu0 0.0
    %1085 = vmatpush1.msra.mxu0 0.0
    %1086 = vmatprep.subr.mxu0 0.0
    %1087 = vmatpush1.msra.mxu0 0.0
    %1088 = vmatprep.subr.mxu0 0.0
    %1089 = vmatpush1.msra.mxu0 0.0
    %1090 = vmatprep.subr.mxu0 0.0
    %1091 = vmatpush1.msra.mxu0 0.0
    %1092 = vmatprep.subr.mxu0 0.0
    %1093 = vmatpush1.msra.mxu0 0.0
    %1094 = vmatprep.subr.mxu0 0.0
    %1095 = vmatpush1.msra.mxu0 0.0
    %1096 = vmatprep.subr.mxu0 0.0
    %1097 = vmatpush1.msra.mxu0 0.0
    %1098 = vmatprep.subr.mxu0 0.0
    %1099 = vmatpush1.msra.mxu0 0.0
    %1100 = vmatprep.subr.mxu0 0.0
    %1101 = vmatpush1.msra.mxu0 0.0
    %1102 = vmatprep.subr.mxu0 0.0
    %1103 = vmatpush1.msra.mxu0 0.0
    %1104 = vmatprep.subr.mxu0 0.0
    %1105 = vmatpush1.msra.mxu0 0.0
    %1106 = vmatprep.subr.mxu0 0.0
    %1107 = vmatpush1.msra.mxu0 0.0
    %1108 = vmatprep.subr.mxu0 0.0
    %1109 = vmatpush1.msra.mxu0 0.0
    %1110 = vmatprep.subr.mxu0 0.0
    %1111 = vmatpush1.msra.mxu0 0.0
    %1112 = vmatprep.subr.mxu0 0.0
    %1113 = vmatpush1.msra.mxu0 0.0
    %1114 = vmatprep.subr.mxu0 0.0
    %1115 = vmatpush1.msra.mxu0 0.0
    %1116 = vmatprep.subr.mxu0 0.0
    %1117 = vmatpush1.msra.mxu0 0.0
    %1118 = vmatprep.subr.mxu0 0.0
    %1119 = vmatpush1.msra.mxu0 0.0
    %1120 = vmatprep.subr.mxu0 0.0
    %1121 = vmatpush1.msra.mxu0 0.0
    %1122 = vmatprep.subr.mxu0 0.0
    %1123 = vmatpush1.msra.mxu0 0.0
    %1124 = vmatprep.subr.mxu0 0.0
    %1125 = vmatpush1.msra.mxu0 0.0
    %1126 = vmatprep.mubr.f32.mxu0 0.0
    %1127 = vmatmul.mubr.f32.gmra.mrb[0].mxu0 %v1015
    %v1128 = vpop.f32.mrb[0].mxu0
    %v1129 = vadd.f32 0.0, %v1128
    %v1130 = vpop.f32.mrb[0].mxu0
    %1131 = vmatprep.mubr.f32.mxu0 0.0
    %1132 = vmatmul.mubr.f32.gmra.mrb[0].mxu0 %v1018
    %v1133 = vpop.f32.mrb[0].mxu0
    %v1134 = vadd.f32 0.0, %v1133
    %v1135 = vpop.f32.mrb[0].mxu0
    %1136 = vmatprep.mubr.f32.mxu0 0.0
    %1137 = vmatmul.mubr.f32.gmra.mrb[0].mxu0 %v1021
    %v1138 = vpop.f32.mrb[0].mxu0
    %v1139 = vadd.f32 0.0, %v1138
    %v1140 = vpop.f32.mrb[0].mxu0
    %1141 = vmatprep.mubr.f32.mxu0 0.0
    %1142 = vmatmul.mubr.f32.gmra.mrb[0].mxu0 %v1024
    %v1143 = vpop.f32.mrb[0].mxu0
    %v1144 = vadd.f32 0.0, %v1143
    %v1145 = vpop.f32.mrb[0].mxu0
    %1146 = vmatprep.mubr.f32.mxu0 0.0
    %1147 = vmatmul.mubr.f32.gmra.mrb[0].mxu0 %v1027
    %v1148 = vpop.f32.mrb[0].mxu0
    %v1149 = vadd.f32 0.0, %v1148
    %v1150 = vpop.f32.mrb[0].mxu0
    %1151 = vmatprep.mubr.f32.mxu0 0.0
    %1152 = vmatmul.mubr.f32.gmra.mrb[0].mxu0 %v1030
    %v1153 = vpop.f32.mrb[0].mxu0
    %v1154 = vadd.f32 0.0, %v1153
    %v1155 = vpop.f32.mrb[0].mxu0
    %1156 = vmatprep.mubr.f32.mxu0 0.0
    %1157 = vmatmul.mubr.f32.gmra.mrb[0].mxu0 %v1033
    %v1158 = vpop.f32.mrb[0].mxu0
    %v1159 = vadd.f32 0.0, %v1158
    %v1160 = vpop.f32.mrb[0].mxu0
    %1161 = vmatprep.mubr.f32.mxu0 0.0
    %1162 = vmatmul.mubr.f32.gmra.mrb[0].mxu0 %v1036
    %v1163 = vpop.f32.mrb[0].mxu0
    %v1164 = vadd.f32 0.0, %v1163
    %v1165 = vpop.f32.mrb[0].mxu0
    %1166 = vmatprep.mubr.f32.mxu0 0.0
    %1167 = vmatmul.mubr.f32.gmra.mrb[0].mxu0 %v1039
    %v1168 = vpop.f32.mrb[0].mxu0
    %v1169 = vadd.f32 0.0, %v1168
    %v1170 = vpop.f32.mrb[0].mxu0
    %1171 = vmatprep.mubr.f32.mxu0 0.0
    %1172 = vmatmul.mubr.f32.gmra.mrb[0].mxu0 %v1042
    %v1173 = vpop.f32.mrb[0].mxu0
    %v1174 = vadd.f32 0.0, %v1173
    %v1175 = vpop.f32.mrb[0].mxu0
    %1176 = vmatprep.mubr.f32.mxu0 0.0
    %1177 = vmatmul.mubr.f32.gmra.mrb[0].mxu0 %v1045
    %v1178 = vpop.f32.mrb[0].mxu0
    %v1179 = vadd.f32 0.0, %v1178
    %v1180 = vpop.f32.mrb[0].mxu0
    %1181 = vmatprep.mubr.f32.mxu0 0.0
    %1182 = vmatmul.mubr.f32.gmra.mrb[0].mxu0 %v1048
    %v1183 = vpop.f32.mrb[0].mxu0
    %v1184 = vadd.f32 0.0, %v1183
    %v1185 = vpop.f32.mrb[0].mxu0
    %1186 = vmatprep.mubr.f32.mxu0 0.0
    %1187 = vmatmul.mubr.f32.gmra.mrb[0].mxu0 %v1051
    %v1188 = vpop.f32.mrb[0].mxu0
    %v1189 = vadd.f32 0.0, %v1188
    %v1190 = vpop.f32.mrb[0].mxu0
    %1191 = vmatprep.mubr.f32.mxu0 0.0
    %1192 = vmatmul.mubr.f32.gmra.mrb[0].mxu0 %v1054
    %v1193 = vpop.f32.mrb[0].mxu0
    %v1194 = vadd.f32 0.0, %v1193
    %v1195 = vpop.f32.mrb[0].mxu0
    %1196 = vmatprep.mubr.f32.mxu0 0.0
    %1197 = vmatmul.mubr.f32.gmra.mrb[0].mxu0 %v1057
    %v1198 = vpop.f32.mrb[0].mxu0
    %v1199 = vadd.f32 0.0, %v1198
    %v1200 = vpop.f32.mrb[0].mxu0
    %1201 = vmatprep.mubr.f32.mxu0 0.0
    %1202 = vmatmul.mubr.f32.gmra.mrb[0].mxu0 %v1060
    %v1203 = vpop.f32.mrb[0].mxu0
    %v1204 = vadd.f32 0.0, %v1203
    %v1205 = vpop.f32.mrb[0].mxu0
    %1206 = vdwg.mxu0
    %v1207 = vadd.f32 %v979, %v1129
    %v1208 = vadd.f32 %v980, %v1134
    %v1209 = vadd.f32 %v981, %v1139
    %v1210 = vadd.f32 %v982, %v1144
    %v1211 = vadd.f32 %v983, %v1149
    %v1212 = vadd.f32 %v984, %v1154
    %v1213 = vadd.f32 %v985, %v1159
    %v1214 = vadd.f32 %v986, %v1164
    %v1215 = vadd.f32 %v987, %v1169
    %v1216 = vadd.f32 %v988, %v1174
    %v1217 = vadd.f32 %v989, %v1179
    %v1218 = vadd.f32 %v990, %v1184
    %v1219 = vadd.f32 %v991, %v1189
    %v1220 = vadd.f32 %v992, %v1194
    %v1221 = vadd.f32 %v993, %v1199
    %v1222 = vadd.f32 %v994, %v1204
    %v1223 = vld [vmem:[%s99 + $0x9] sm:$0xff]
    %v1224 = vld [vmem:[%s99 + $0x21] sm:$0xff]
    %v1225 = vld [vmem:[%s99 + $0x39] sm:$0xff]
    %v1226 = vld [vmem:[%s99 + $0x51] sm:$0xff]
    %v1227 = vld [vmem:[%s99 + $0x69] sm:$0xff]
    %v1228 = vld [vmem:[%s99 + $0x81] sm:$0xff]
    %v1229 = vld [vmem:[%s99 + $0x99] sm:$0xff]
    %v1230 = vld [vmem:[%s99 + $0xb1] sm:$0xff]
    %v1231 = vld [vmem:[%s99 + $0xf9] sm:$0xff]
    %v1232 = vld [vmem:[%s99 + $0x111] sm:$0xff]
    %v1233 = vld [vmem:[%s99 + $0x129] sm:$0xff]
    %v1234 = vld [vmem:[%s99 + $0x141] sm:$0xff]
    %v1235 = vld [vmem:[%s99 + $0x159] sm:$0xff]
    %v1236 = vld [vmem:[%s99 + $0x171] sm:$0xff]
    %v1237 = vld [vmem:[%s99 + $0x189] sm:$0xff]
    %v1238 = vld [vmem:[%s99 + $0x1a1] sm:$0xff]
    %s1239 = scalar_lea.vmem %s1, 80
    %v1240 = vld [vmem:[%s1239] sm:$0xff]
    %v1241 = vld [vmem:[%s1239 + $0x8] sm:$0xff]
    %v1243 = vsel %vm21, %v1223, 0
    %v1246 = vsel %vm21, %v1224, 0
    %v1249 = vsel %vm21, %v1225, 0
    %v1252 = vsel %vm21, %v1226, 0
    %v1255 = vsel %vm21, %v1227, 0
    %v1258 = vsel %vm21, %v1228, 0
    %v1261 = vsel %vm21, %v1229, 0
    %v1264 = vsel %vm21, %v1230, 0
    %v1267 = vsel %vm21, %v1231, 0
    %v1270 = vsel %vm21, %v1232, 0
    %v1273 = vsel %vm21, %v1233, 0
    %v1276 = vsel %vm21, %v1234, 0
    %v1279 = vsel %vm21, %v1235, 0
    %v1282 = vsel %vm21, %v1236, 0
    %v1285 = vsel %vm21, %v1237, 0
    %v1288 = vsel %vm21, %v1238, 0
    %1290 = vmatprep.subr.mxu0 0.0
    %1291 = vmatpush1.msra.mxu0 %v1240
    %1292 = vmatprep.subr.mxu0 0.0
    %1293 = vmatpush1.msra.mxu0 %v1241
    %1294 = vmatprep.subr.mxu0 0.0
    %1295 = vmatpush1.msra.mxu0 0.0
    %1296 = vmatprep.subr.mxu0 0.0
    %1297 = vmatpush1.msra.mxu0 0.0
    %1298 = vmatprep.subr.mxu0 0.0
    %1299 = vmatpush1.msra.mxu0 0.0
    %1300 = vmatprep.subr.mxu0 0.0
    %1301 = vmatpush1.msra.mxu0 0.0
    %1302 = vmatprep.subr.mxu0 0.0
    %1303 = vmatpush1.msra.mxu0 0.0
    %1304 = vmatprep.subr.mxu0 0.0
    %1305 = vmatpush1.msra.mxu0 0.0
    %1306 = vmatprep.subr.mxu0 0.0
    %1307 = vmatpush1.msra.mxu0 0.0
    %1308 = vmatprep.subr.mxu0 0.0
    %1309 = vmatpush1.msra.mxu0 0.0
    %1310 = vmatprep.subr.mxu0 0.0
    %1311 = vmatpush1.msra.mxu0 0.0
    %1312 = vmatprep.subr.mxu0 0.0
    %1313 = vmatpush1.msra.mxu0 0.0
    %1314 = vmatprep.subr.mxu0 0.0
    %1315 = vmatpush1.msra.mxu0 0.0
    %1316 = vmatprep.subr.mxu0 0.0
    %1317 = vmatpush1.msra.mxu0 0.0
    %1318 = vmatprep.subr.mxu0 0.0
    %1319 = vmatpush1.msra.mxu0 0.0
    %1320 = vmatprep.subr.mxu0 0.0
    %1321 = vmatpush1.msra.mxu0 0.0
    %1322 = vmatprep.subr.mxu0 0.0
    %1323 = vmatpush1.msra.mxu0 0.0
    %1324 = vmatprep.subr.mxu0 0.0
    %1325 = vmatpush1.msra.mxu0 0.0
    %1326 = vmatprep.subr.mxu0 0.0
    %1327 = vmatpush1.msra.mxu0 0.0
    %1328 = vmatprep.subr.mxu0 0.0
    %1329 = vmatpush1.msra.mxu0 0.0
    %1330 = vmatprep.subr.mxu0 0.0
    %1331 = vmatpush1.msra.mxu0 0.0
    %1332 = vmatprep.subr.mxu0 0.0
    %1333 = vmatpush1.msra.mxu0 0.0
    %1334 = vmatprep.subr.mxu0 0.0
    %1335 = vmatpush1.msra.mxu0 0.0
    %1336 = vmatprep.subr.mxu0 0.0
    %1337 = vmatpush1.msra.mxu0 0.0
    %1338 = vmatprep.subr.mxu0 0.0
    %1339 = vmatpush1.msra.mxu0 0.0
    %1340 = vmatprep.subr.mxu0 0.0
    %1341 = vmatpush1.msra.mxu0 0.0
    %1342 = vmatprep.subr.mxu0 0.0
    %1343 = vmatpush1.msra.mxu0 0.0
    %1344 = vmatprep.subr.mxu0 0.0
    %1345 = vmatpush1.msra.mxu0 0.0
    %1346 = vmatprep.subr.mxu0 0.0
    %1347 = vmatpush1.msra.mxu0 0.0
    %1348 = vmatprep.subr.mxu0 0.0
    %1349 = vmatpush1.msra.mxu0 0.0
    %1350 = vmatprep.subr.mxu0 0.0
    %1351 = vmatpush1.msra.mxu0 0.0
    %1352 = vmatprep.subr.mxu0 0.0
    %1353 = vmatpush1.msra.mxu0 0.0
    %1354 = vmatprep.mubr.f32.mxu0 0.0
    %1355 = vmatmul.mubr.f32.gmra.mrb[0].mxu0 %v1243
    %v1356 = vpop.f32.mrb[0].mxu0
    %v1357 = vadd.f32 0.0, %v1356
    %v1358 = vpop.f32.mrb[0].mxu0
    %1359 = vmatprep.mubr.f32.mxu0 0.0
    %1360 = vmatmul.mubr.f32.gmra.mrb[0].mxu0 %v1246
    %v1361 = vpop.f32.mrb[0].mxu0
    %v1362 = vadd.f32 0.0, %v1361
    %v1363 = vpop.f32.mrb[0].mxu0
    %1364 = vmatprep.mubr.f32.mxu0 0.0
    %1365 = vmatmul.mubr.f32.gmra.mrb[0].mxu0 %v1249
    %v1366 = vpop.f32.mrb[0].mxu0
    %v1367 = vadd.f32 0.0, %v1366
    %v1368 = vpop.f32.mrb[0].mxu0
    %1369 = vmatprep.mubr.f32.mxu0 0.0
    %1370 = vmatmul.mubr.f32.gmra.mrb[0].mxu0 %v1252
    %v1371 = vpop.f32.mrb[0].mxu0
    %v1372 = vadd.f32 0.0, %v1371
    %v1373 = vpop.f32.mrb[0].mxu0
    %1374 = vmatprep.mubr.f32.mxu0 0.0
    %1375 = vmatmul.mubr.f32.gmra.mrb[0].mxu0 %v1255
    %v1376 = vpop.f32.mrb[0].mxu0
    %v1377 = vadd.f32 0.0, %v1376
    %v1378 = vpop.f32.mrb[0].mxu0
    %1379 = vmatprep.mubr.f32.mxu0 0.0
    %1380 = vmatmul.mubr.f32.gmra.mrb[0].mxu0 %v1258
    %v1381 = vpop.f32.mrb[0].mxu0
    %v1382 = vadd.f32 0.0, %v1381
    %v1383 = vpop.f32.mrb[0].mxu0
    %1384 = vmatprep.mubr.f32.mxu0 0.0
    %1385 = vmatmul.mubr.f32.gmra.mrb[0].mxu0 %v1261
    %v1386 = vpop.f32.mrb[0].mxu0
    %v1387 = vadd.f32 0.0, %v1386
    %v1388 = vpop.f32.mrb[0].mxu0
    %1389 = vmatprep.mubr.f32.mxu0 0.0
    %1390 = vmatmul.mubr.f32.gmra.mrb[0].mxu0 %v1264
    %v1391 = vpop.f32.mrb[0].mxu0
    %v1392 = vadd.f32 0.0, %v1391
    %v1393 = vpop.f32.mrb[0].mxu0
    %1394 = vmatprep.mubr.f32.mxu0 0.0
    %1395 = vmatmul.mubr.f32.gmra.mrb[0].mxu0 %v1267
    %v1396 = vpop.f32.mrb[0].mxu0
    %v1397 = vadd.f32 0.0, %v1396
    %v1398 = vpop.f32.mrb[0].mxu0
    %1399 = vmatprep.mubr.f32.mxu0 0.0
    %1400 = vmatmul.mubr.f32.gmra.mrb[0].mxu0 %v1270
    %v1401 = vpop.f32.mrb[0].mxu0
    %v1402 = vadd.f32 0.0, %v1401
    %v1403 = vpop.f32.mrb[0].mxu0
    %1404 = vmatprep.mubr.f32.mxu0 0.0
    %1405 = vmatmul.mubr.f32.gmra.mrb[0].mxu0 %v1273
    %v1406 = vpop.f32.mrb[0].mxu0
    %v1407 = vadd.f32 0.0, %v1406
    %v1408 = vpop.f32.mrb[0].mxu0
    %1409 = vmatprep.mubr.f32.mxu0 0.0
    %1410 = vmatmul.mubr.f32.gmra.mrb[0].mxu0 %v1276
    %v1411 = vpop.f32.mrb[0].mxu0
    %v1412 = vadd.f32 0.0, %v1411
    %v1413 = vpop.f32.mrb[0].mxu0
    %1414 = vmatprep.mubr.f32.mxu0 0.0
    %1415 = vmatmul.mubr.f32.gmra.mrb[0].mxu0 %v1279
    %v1416 = vpop.f32.mrb[0].mxu0
    %v1417 = vadd.f32 0.0, %v1416
    %v1418 = vpop.f32.mrb[0].mxu0
    %1419 = vmatprep.mubr.f32.mxu0 0.0
    %1420 = vmatmul.mubr.f32.gmra.mrb[0].mxu0 %v1282
    %v1421 = vpop.f32.mrb[0].mxu0
    %v1422 = vadd.f32 0.0, %v1421
    %v1423 = vpop.f32.mrb[0].mxu0
    %1424 = vmatprep.mubr.f32.mxu0 0.0
    %1425 = vmatmul.mubr.f32.gmra.mrb[0].mxu0 %v1285
    %v1426 = vpop.f32.mrb[0].mxu0
    %v1427 = vadd.f32 0.0, %v1426
    %v1428 = vpop.f32.mrb[0].mxu0
    %1429 = vmatprep.mubr.f32.mxu0 0.0
    %1430 = vmatmul.mubr.f32.gmra.mrb[0].mxu0 %v1288
    %v1431 = vpop.f32.mrb[0].mxu0
    %v1432 = vadd.f32 0.0, %v1431
    %v1433 = vpop.f32.mrb[0].mxu0
    %1434 = vdwg.mxu0
    %v1435 = vadd.f32 %v1207, %v1357
    %v1436 = vadd.f32 %v1208, %v1362
    %v1437 = vadd.f32 %v1209, %v1367
    %v1438 = vadd.f32 %v1210, %v1372
    %v1439 = vadd.f32 %v1211, %v1377
    %v1440 = vadd.f32 %v1212, %v1382
    %v1441 = vadd.f32 %v1213, %v1387
    %v1442 = vadd.f32 %v1214, %v1392
    %v1443 = vadd.f32 %v1215, %v1397
    %v1444 = vadd.f32 %v1216, %v1402
    %v1445 = vadd.f32 %v1217, %v1407
    %v1446 = vadd.f32 %v1218, %v1412
    %v1447 = vadd.f32 %v1219, %v1417
    %v1448 = vadd.f32 %v1220, %v1422
    %v1449 = vadd.f32 %v1221, %v1427
    %v1450 = vadd.f32 %v1222, %v1432
    %s1451 = scalar_lea.vmem [#allocation2], 48
    %v1452 = vld [vmem:[%s1451 + $0x7] sm:$0xff]
    %v1453 = vld [vmem:[%s1451 + $0x1f] sm:$0xff]
    %v1454 = vld [vmem:[%s1451 + $0x37] sm:$0xff]
    %v1455 = vld [vmem:[%s1451 + $0x4f] sm:$0xff]
    %v1456 = vld [vmem:[%s1451 + $0x67] sm:$0xff]
    %v1457 = vld [vmem:[%s1451 + $0x7f] sm:$0xff]
    %v1458 = vld [vmem:[%s1451 + $0x97] sm:$0xff]
    %v1459 = vld [vmem:[%s1451 + $0xaf] sm:$0xff]
    %v1460 = vld [vmem:[%s1451 + $0xf7] sm:$0xff]
    %v1461 = vld [vmem:[%s1451 + $0x10f] sm:$0xff]
    %v1462 = vld [vmem:[%s1451 + $0x127] sm:$0xff]
    %v1463 = vld [vmem:[%s1451 + $0x13f] sm:$0xff]
    %v1464 = vld [vmem:[%s1451 + $0x157] sm:$0xff]
    %v1465 = vld [vmem:[%s1451 + $0x16f] sm:$0xff]
    %v1466 = vld [vmem:[%s1451 + $0x187] sm:$0xff]
    %v1467 = vld [vmem:[%s1451 + $0x19f] sm:$0xff]
    %s1468 = scalar_lea.vmem %s1, 96
    %v1469 = vld [vmem:[%s1468] sm:$0xff]
    %v1470 = vld [vmem:[%s1468 + $0x8] sm:$0xff]
    %v1472 = vsel %vm21, %v1452, 0
    %v1475 = vsel %vm21, %v1453, 0
    %v1478 = vsel %vm21, %v1454, 0
    %v1481 = vsel %vm21, %v1455, 0
    %v1484 = vsel %vm21, %v1456, 0
    %v1487 = vsel %vm21, %v1457, 0
    %v1490 = vsel %vm21, %v1458, 0
    %v1493 = vsel %vm21, %v1459, 0
    %v1496 = vsel %vm21, %v1460, 0
    %v1499 = vsel %vm21, %v1461, 0
    %v1502 = vsel %vm21, %v1462, 0
    %v1505 = vsel %vm21, %v1463, 0
    %v1508 = vsel %vm21, %v1464, 0
    %v1511 = vsel %vm21, %v1465, 0
    %v1514 = vsel %vm21, %v1466, 0
    %v1517 = vsel %vm21, %v1467, 0
    %1519 = vmatprep.subr.mxu0 0.0
    %1520 = vmatpush1.msra.mxu0 %v1469
    %1521 = vmatprep.subr.mxu0 0.0
    %1522 = vmatpush1.msra.mxu0 %v1470
    %1523 = vmatprep.subr.mxu0 0.0
    %1524 = vmatpush1.msra.mxu0 0.0
    %1525 = vmatprep.subr.mxu0 0.0
    %1526 = vmatpush1.msra.mxu0 0.0
    %1527 = vmatprep.subr.mxu0 0.0
    %1528 = vmatpush1.msra.mxu0 0.0
    %1529 = vmatprep.subr.mxu0 0.0
    %1530 = vmatpush1.msra.mxu0 0.0
    %1531 = vmatprep.subr.mxu0 0.0
    %1532 = vmatpush1.msra.mxu0 0.0
    %1533 = vmatprep.subr.mxu0 0.0
    %1534 = vmatpush1.msra.mxu0 0.0
    %1535 = vmatprep.subr.mxu0 0.0
    %1536 = vmatpush1.msra.mxu0 0.0
    %1537 = vmatprep.subr.mxu0 0.0
    %1538 = vmatpush1.msra.mxu0 0.0
    %1539 = vmatprep.subr.mxu0 0.0
    %1540 = vmatpush1.msra.mxu0 0.0
    %1541 = vmatprep.subr.mxu0 0.0
    %1542 = vmatpush1.msra.mxu0 0.0
    %1543 = vmatprep.subr.mxu0 0.0
    %1544 = vmatpush1.msra.mxu0 0.0
    %1545 = vmatprep.subr.mxu0 0.0
    %1546 = vmatpush1.msra.mxu0 0.0
    %1547 = vmatprep.subr.mxu0 0.0
    %1548 = vmatpush1.msra.mxu0 0.0
    %1549 = vmatprep.subr.mxu0 0.0
    %1550 = vmatpush1.msra.mxu0 0.0
    %1551 = vmatprep.subr.mxu0 0.0
    %1552 = vmatpush1.msra.mxu0 0.0
    %1553 = vmatprep.subr.mxu0 0.0
    %1554 = vmatpush1.msra.mxu0 0.0
    %1555 = vmatprep.subr.mxu0 0.0
    %1556 = vmatpush1.msra.mxu0 0.0
    %1557 = vmatprep.subr.mxu0 0.0
    %1558 = vmatpush1.msra.mxu0 0.0
    %1559 = vmatprep.subr.mxu0 0.0
    %1560 = vmatpush1.msra.mxu0 0.0
    %1561 = vmatprep.subr.mxu0 0.0
    %1562 = vmatpush1.msra.mxu0 0.0
    %1563 = vmatprep.subr.mxu0 0.0
    %1564 = vmatpush1.msra.mxu0 0.0
    %1565 = vmatprep.subr.mxu0 0.0
    %1566 = vmatpush1.msra.mxu0 0.0
    %1567 = vmatprep.subr.mxu0 0.0
    %1568 = vmatpush1.msra.mxu0 0.0
    %1569 = vmatprep.subr.mxu0 0.0
    %1570 = vmatpush1.msra.mxu0 0.0
    %1571 = vmatprep.subr.mxu0 0.0
    %1572 = vmatpush1.msra.mxu0 0.0
    %1573 = vmatprep.subr.mxu0 0.0
    %1574 = vmatpush1.msra.mxu0 0.0
    %1575 = vmatprep.subr.mxu0 0.0
    %1576 = vmatpush1.msra.mxu0 0.0
    %1577 = vmatprep.subr.mxu0 0.0
    %1578 = vmatpush1.msra.mxu0 0.0
    %1579 = vmatprep.subr.mxu0 0.0
    %1580 = vmatpush1.msra.mxu0 0.0
    %1581 = vmatprep.subr.mxu0 0.0
    %1582 = vmatpush1.msra.mxu0 0.0
    %1583 = vmatprep.mubr.f32.mxu0 0.0
    %1584 = vmatmul.mubr.f32.gmra.mrb[0].mxu0 %v1472
    %v1585 = vpop.f32.mrb[0].mxu0
    %v1586 = vadd.f32 0.0, %v1585
    %v1587 = vpop.f32.mrb[0].mxu0
    %1588 = vmatprep.mubr.f32.mxu0 0.0
    %1589 = vmatmul.mubr.f32.gmra.mrb[0].mxu0 %v1475
    %v1590 = vpop.f32.mrb[0].mxu0
    %v1591 = vadd.f32 0.0, %v1590
    %v1592 = vpop.f32.mrb[0].mxu0
    %1593 = vmatprep.mubr.f32.mxu0 0.0
    %1594 = vmatmul.mubr.f32.gmra.mrb[0].mxu0 %v1478
    %v1595 = vpop.f32.mrb[0].mxu0
    %v1596 = vadd.f32 0.0, %v1595
    %v1597 = vpop.f32.mrb[0].mxu0
    %1598 = vmatprep.mubr.f32.mxu0 0.0
    %1599 = vmatmul.mubr.f32.gmra.mrb[0].mxu0 %v1481
    %v1600 = vpop.f32.mrb[0].mxu0
    %v1601 = vadd.f32 0.0, %v1600
    %v1602 = vpop.f32.mrb[0].mxu0
    %1603 = vmatprep.mubr.f32.mxu0 0.0
    %1604 = vmatmul.mubr.f32.gmra.mrb[0].mxu0 %v1484
    %v1605 = vpop.f32.mrb[0].mxu0
    %v1606 = vadd.f32 0.0, %v1605
    %v1607 = vpop.f32.mrb[0].mxu0
    %1608 = vmatprep.mubr.f32.mxu0 0.0
    %1609 = vmatmul.mubr.f32.gmra.mrb[0].mxu0 %v1487
    %v1610 = vpop.f32.mrb[0].mxu0
    %v1611 = vadd.f32 0.0, %v1610
    %v1612 = vpop.f32.mrb[0].mxu0
    %1613 = vmatprep.mubr.f32.mxu0 0.0
    %1614 = vmatmul.mubr.f32.gmra.mrb[0].mxu0 %v1490
    %v1615 = vpop.f32.mrb[0].mxu0
    %v1616 = vadd.f32 0.0, %v1615
    %v1617 = vpop.f32.mrb[0].mxu0
    %1618 = vmatprep.mubr.f32.mxu0 0.0
    %1619 = vmatmul.mubr.f32.gmra.mrb[0].mxu0 %v1493
    %v1620 = vpop.f32.mrb[0].mxu0
    %v1621 = vadd.f32 0.0, %v1620
    %v1622 = vpop.f32.mrb[0].mxu0
    %1623 = vmatprep.mubr.f32.mxu0 0.0
    %1624 = vmatmul.mubr.f32.gmra.mrb[0].mxu0 %v1496
    %v1625 = vpop.f32.mrb[0].mxu0
    %v1626 = vadd.f32 0.0, %v1625
    %v1627 = vpop.f32.mrb[0].mxu0
    %1628 = vmatprep.mubr.f32.mxu0 0.0
    %1629 = vmatmul.mubr.f32.gmra.mrb[0].mxu0 %v1499
    %v1630 = vpop.f32.mrb[0].mxu0
    %v1631 = vadd.f32 0.0, %v1630
    %v1632 = vpop.f32.mrb[0].mxu0
    %1633 = vmatprep.mubr.f32.mxu0 0.0
    %1634 = vmatmul.mubr.f32.gmra.mrb[0].mxu0 %v1502
    %v1635 = vpop.f32.mrb[0].mxu0
    %v1636 = vadd.f32 0.0, %v1635
    %v1637 = vpop.f32.mrb[0].mxu0
    %1638 = vmatprep.mubr.f32.mxu0 0.0
    %1639 = vmatmul.mubr.f32.gmra.mrb[0].mxu0 %v1505
    %v1640 = vpop.f32.mrb[0].mxu0
    %v1641 = vadd.f32 0.0, %v1640
    %v1642 = vpop.f32.mrb[0].mxu0
    %1643 = vmatprep.mubr.f32.mxu0 0.0
    %1644 = vmatmul.mubr.f32.gmra.mrb[0].mxu0 %v1508
    %v1645 = vpop.f32.mrb[0].mxu0
    %v1646 = vadd.f32 0.0, %v1645
    %v1647 = vpop.f32.mrb[0].mxu0
    %1648 = vmatprep.mubr.f32.mxu0 0.0
    %1649 = vmatmul.mubr.f32.gmra.mrb[0].mxu0 %v1511
    %v1650 = vpop.f32.mrb[0].mxu0
    %v1651 = vadd.f32 0.0, %v1650
    %v1652 = vpop.f32.mrb[0].mxu0
    %1653 = vmatprep.mubr.f32.mxu0 0.0
    %1654 = vmatmul.mubr.f32.gmra.mrb[0].mxu0 %v1514
    %v1655 = vpop.f32.mrb[0].mxu0
    %v1656 = vadd.f32 0.0, %v1655
    %v1657 = vpop.f32.mrb[0].mxu0
    %1658 = vmatprep.mubr.f32.mxu0 0.0
    %1659 = vmatmul.mubr.f32.gmra.mrb[0].mxu0 %v1517
    %v1660 = vpop.f32.mrb[0].mxu0
    %v1661 = vadd.f32 0.0, %v1660
    %v1662 = vpop.f32.mrb[0].mxu0
    %1663 = vdwg.mxu0
    %v1664 = vadd.f32 %v1435, %v1586
    %v1665 = vadd.f32 %v1436, %v1591
    %v1666 = vadd.f32 %v1437, %v1596
    %v1667 = vadd.f32 %v1438, %v1601
    %v1668 = vadd.f32 %v1439, %v1606
    %v1669 = vadd.f32 %v1440, %v1611
    %v1670 = vadd.f32 %v1441, %v1616
    %v1671 = vadd.f32 %v1442, %v1621
    %v1672 = vadd.f32 %v1443, %v1626
    %v1673 = vadd.f32 %v1444, %v1631
    %v1674 = vadd.f32 %v1445, %v1636
    %v1675 = vadd.f32 %v1446, %v1641
    %v1676 = vadd.f32 %v1447, %v1646
    %v1677 = vadd.f32 %v1448, %v1651
    %v1678 = vadd.f32 %v1449, %v1656
    %v1679 = vadd.f32 %v1450, %v1661
    %v1680 = vld [vmem:[%s1451 + $0x8] sm:$0xff]
    %v1681 = vld [vmem:[%s1451 + $0x20] sm:$0xff]
    %v1682 = vld [vmem:[%s1451 + $0x38] sm:$0xff]
    %v1683 = vld [vmem:[%s1451 + $0x50] sm:$0xff]
    %v1684 = vld [vmem:[%s1451 + $0x68] sm:$0xff]
    %v1685 = vld [vmem:[%s1451 + $0x80] sm:$0xff]
    %v1686 = vld [vmem:[%s1451 + $0x98] sm:$0xff]
    %v1687 = vld [vmem:[%s1451 + $0xb0] sm:$0xff]
    %v1688 = vld [vmem:[%s1451 + $0xf8] sm:$0xff]
    %v1689 = vld [vmem:[%s1451 + $0x110] sm:$0xff]
    %v1690 = vld [vmem:[%s1451 + $0x128] sm:$0xff]
    %v1691 = vld [vmem:[%s1451 + $0x140] sm:$0xff]
    %v1692 = vld [vmem:[%s1451 + $0x158] sm:$0xff]
    %v1693 = vld [vmem:[%s1451 + $0x170] sm:$0xff]
    %v1694 = vld [vmem:[%s1451 + $0x188] sm:$0xff]
    %v1695 = vld [vmem:[%s1451 + $0x1a0] sm:$0xff]
    %s1696 = scalar_lea.vmem %s1, 112
    %v1697 = vld [vmem:[%s1696] sm:$0xff]
    %v1698 = vld [vmem:[%s1696 + $0x8] sm:$0xff]
    %v1700 = vsel %vm21, %v1680, 0
    %v1703 = vsel %vm21, %v1681, 0
    %v1706 = vsel %vm21, %v1682, 0
    %v1709 = vsel %vm21, %v1683, 0
    %v1712 = vsel %vm21, %v1684, 0
    %v1715 = vsel %vm21, %v1685, 0
    %v1718 = vsel %vm21, %v1686, 0
    %v1721 = vsel %vm21, %v1687, 0
    %v1724 = vsel %vm21, %v1688, 0
    %v1727 = vsel %vm21, %v1689, 0
    %v1730 = vsel %vm21, %v1690, 0
    %v1733 = vsel %vm21, %v1691, 0
    %v1736 = vsel %vm21, %v1692, 0
    %v1739 = vsel %vm21, %v1693, 0
    %v1742 = vsel %vm21, %v1694, 0
    %v1745 = vsel %vm21, %v1695, 0
    %1747 = vmatprep.subr.mxu0 0.0
    %1748 = vmatpush1.msra.mxu0 %v1697
    %1749 = vmatprep.subr.mxu0 0.0
    %1750 = vmatpush1.msra.mxu0 %v1698
    %1751 = vmatprep.subr.mxu0 0.0
    %1752 = vmatpush1.msra.mxu0 0.0
    %1753 = vmatprep.subr.mxu0 0.0
    %1754 = vmatpush1.msra.mxu0 0.0
    %1755 = vmatprep.subr.mxu0 0.0
    %1756 = vmatpush1.msra.mxu0 0.0
    %1757 = vmatprep.subr.mxu0 0.0
    %1758 = vmatpush1.msra.mxu0 0.0
    %1759 = vmatprep.subr.mxu0 0.0
    %1760 = vmatpush1.msra.mxu0 0.0
    %1761 = vmatprep.subr.mxu0 0.0
    %1762 = vmatpush1.msra.mxu0 0.0
    %1763 = vmatprep.subr.mxu0 0.0
    %1764 = vmatpush1.msra.mxu0 0.0
    %1765 = vmatprep.subr.mxu0 0.0
    %1766 = vmatpush1.msra.mxu0 0.0
    %1767 = vmatprep.subr.mxu0 0.0
    %1768 = vmatpush1.msra.mxu0 0.0
    %1769 = vmatprep.subr.mxu0 0.0
    %1770 = vmatpush1.msra.mxu0 0.0
    %1771 = vmatprep.subr.mxu0 0.0
    %1772 = vmatpush1.msra.mxu0 0.0
    %1773 = vmatprep.subr.mxu0 0.0
    %1774 = vmatpush1.msra.mxu0 0.0
    %1775 = vmatprep.subr.mxu0 0.0
    %1776 = vmatpush1.msra.mxu0 0.0
    %1777 = vmatprep.subr.mxu0 0.0
    %1778 = vmatpush1.msra.mxu0 0.0
    %1779 = vmatprep.subr.mxu0 0.0
    %1780 = vmatpush1.msra.mxu0 0.0
    %1781 = vmatprep.subr.mxu0 0.0
    %1782 = vmatpush1.msra.mxu0 0.0
    %1783 = vmatprep.subr.mxu0 0.0
    %1784 = vmatpush1.msra.mxu0 0.0
    %1785 = vmatprep.subr.mxu0 0.0
    %1786 = vmatpush1.msra.mxu0 0.0
    %1787 = vmatprep.subr.mxu0 0.0
    %1788 = vmatpush1.msra.mxu0 0.0
    %1789 = vmatprep.subr.mxu0 0.0
    %1790 = vmatpush1.msra.mxu0 0.0
    %1791 = vmatprep.subr.mxu0 0.0
    %1792 = vmatpush1.msra.mxu0 0.0
    %1793 = vmatprep.subr.mxu0 0.0
    %1794 = vmatpush1.msra.mxu0 0.0
    %1795 = vmatprep.subr.mxu0 0.0
    %1796 = vmatpush1.msra.mxu0 0.0
    %1797 = vmatprep.subr.mxu0 0.0
    %1798 = vmatpush1.msra.mxu0 0.0
    %1799 = vmatprep.subr.mxu0 0.0
    %1800 = vmatpush1.msra.mxu0 0.0
    %1801 = vmatprep.subr.mxu0 0.0
    %1802 = vmatpush1.msra.mxu0 0.0
    %1803 = vmatprep.subr.mxu0 0.0
    %1804 = vmatpush1.msra.mxu0 0.0
    %1805 = vmatprep.subr.mxu0 0.0
    %1806 = vmatpush1.msra.mxu0 0.0
    %1807 = vmatprep.subr.mxu0 0.0
    %1808 = vmatpush1.msra.mxu0 0.0
    %1809 = vmatprep.subr.mxu0 0.0
    %1810 = vmatpush1.msra.mxu0 0.0
    %1811 = vmatprep.mubr.f32.mxu0 0.0
    %1812 = vmatmul.mubr.f32.gmra.mrb[0].mxu0 %v1700
    %v1813 = vpop.f32.mrb[0].mxu0
    %v1814 = vadd.f32 0.0, %v1813
    %v1815 = vpop.f32.mrb[0].mxu0
    %1816 = vmatprep.mubr.f32.mxu0 0.0
    %1817 = vmatmul.mubr.f32.gmra.mrb[0].mxu0 %v1703
    %v1818 = vpop.f32.mrb[0].mxu0
    %v1819 = vadd.f32 0.0, %v1818
    %v1820 = vpop.f32.mrb[0].mxu0
    %1821 = vmatprep.mubr.f32.mxu0 0.0
    %1822 = vmatmul.mubr.f32.gmra.mrb[0].mxu0 %v1706
    %v1823 = vpop.f32.mrb[0].mxu0
    %v1824 = vadd.f32 0.0, %v1823
    %v1825 = vpop.f32.mrb[0].mxu0
    %1826 = vmatprep.mubr.f32.mxu0 0.0
    %1827 = vmatmul.mubr.f32.gmra.mrb[0].mxu0 %v1709
    %v1828 = vpop.f32.mrb[0].mxu0
    %v1829 = vadd.f32 0.0, %v1828
    %v1830 = vpop.f32.mrb[0].mxu0
    %1831 = vmatprep.mubr.f32.mxu0 0.0
    %1832 = vmatmul.mubr.f32.gmra.mrb[0].mxu0 %v1712
    %v1833 = vpop.f32.mrb[0].mxu0
    %v1834 = vadd.f32 0.0, %v1833
    %v1835 = vpop.f32.mrb[0].mxu0
    %1836 = vmatprep.mubr.f32.mxu0 0.0
    %1837 = vmatmul.mubr.f32.gmra.mrb[0].mxu0 %v1715
    %v1838 = vpop.f32.mrb[0].mxu0
    %v1839 = vadd.f32 0.0, %v1838
    %v1840 = vpop.f32.mrb[0].mxu0
    %1841 = vmatprep.mubr.f32.mxu0 0.0
    %1842 = vmatmul.mubr.f32.gmra.mrb[0].mxu0 %v1718
    %v1843 = vpop.f32.mrb[0].mxu0
    %v1844 = vadd.f32 0.0, %v1843
    %v1845 = vpop.f32.mrb[0].mxu0
    %1846 = vmatprep.mubr.f32.mxu0 0.0
    %1847 = vmatmul.mubr.f32.gmra.mrb[0].mxu0 %v1721
    %v1848 = vpop.f32.mrb[0].mxu0
    %v1849 = vadd.f32 0.0, %v1848
    %v1850 = vpop.f32.mrb[0].mxu0
    %1851 = vmatprep.mubr.f32.mxu0 0.0
    %1852 = vmatmul.mubr.f32.gmra.mrb[0].mxu0 %v1724
    %v1853 = vpop.f32.mrb[0].mxu0
    %v1854 = vadd.f32 0.0, %v1853
    %v1855 = vpop.f32.mrb[0].mxu0
    %1856 = vmatprep.mubr.f32.mxu0 0.0
    %1857 = vmatmul.mubr.f32.gmra.mrb[0].mxu0 %v1727
    %v1858 = vpop.f32.mrb[0].mxu0
    %v1859 = vadd.f32 0.0, %v1858
    %v1860 = vpop.f32.mrb[0].mxu0
    %1861 = vmatprep.mubr.f32.mxu0 0.0
    %1862 = vmatmul.mubr.f32.gmra.mrb[0].mxu0 %v1730
    %v1863 = vpop.f32.mrb[0].mxu0
    %v1864 = vadd.f32 0.0, %v1863
    %v1865 = vpop.f32.mrb[0].mxu0
    %1866 = vmatprep.mubr.f32.mxu0 0.0
    %1867 = vmatmul.mubr.f32.gmra.mrb[0].mxu0 %v1733
    %v1868 = vpop.f32.mrb[0].mxu0
    %v1869 = vadd.f32 0.0, %v1868
    %v1870 = vpop.f32.mrb[0].mxu0
    %1871 = vmatprep.mubr.f32.mxu0 0.0
    %1872 = vmatmul.mubr.f32.gmra.mrb[0].mxu0 %v1736
    %v1873 = vpop.f32.mrb[0].mxu0
    %v1874 = vadd.f32 0.0, %v1873
    %v1875 = vpop.f32.mrb[0].mxu0
    %1876 = vmatprep.mubr.f32.mxu0 0.0
    %1877 = vmatmul.mubr.f32.gmra.mrb[0].mxu0 %v1739
    %v1878 = vpop.f32.mrb[0].mxu0
    %v1879 = vadd.f32 0.0, %v1878
    %v1880 = vpop.f32.mrb[0].mxu0
    %1881 = vmatprep.mubr.f32.mxu0 0.0
    %1882 = vmatmul.mubr.f32.gmra.mrb[0].mxu0 %v1742
    %v1883 = vpop.f32.mrb[0].mxu0
    %v1884 = vadd.f32 0.0, %v1883
    %v1885 = vpop.f32.mrb[0].mxu0
    %1886 = vmatprep.mubr.f32.mxu0 0.0
    %1887 = vmatmul.mubr.f32.gmra.mrb[0].mxu0 %v1745
    %v1888 = vpop.f32.mrb[0].mxu0
    %v1889 = vadd.f32 0.0, %v1888
    %v1890 = vpop.f32.mrb[0].mxu0
    %1891 = vdwg.mxu0
    %v1892 = vadd.f32 %v1664, %v1814
    %v1893 = vadd.f32 %v1665, %v1819
    %v1894 = vadd.f32 %v1666, %v1824
    %v1895 = vadd.f32 %v1667, %v1829
    %v1896 = vadd.f32 %v1668, %v1834
    %v1897 = vadd.f32 %v1669, %v1839
    %v1898 = vadd.f32 %v1670, %v1844
    %v1899 = vadd.f32 %v1671, %v1849
    %v1900 = vadd.f32 %v1672, %v1854
    %v1901 = vadd.f32 %v1673, %v1859
    %v1902 = vadd.f32 %v1674, %v1864
    %v1903 = vadd.f32 %v1675, %v1869
    %v1904 = vadd.f32 %v1676, %v1874
    %v1905 = vadd.f32 %v1677, %v1879
    %v1906 = vadd.f32 %v1678, %v1884
    %v1907 = vadd.f32 %v1679, %v1889
    %v1908 = vld [vmem:[%s1451 + $0x9] sm:$0xff]
    %v1909 = vld [vmem:[%s1451 + $0x21] sm:$0xff]
    %v1910 = vld [vmem:[%s1451 + $0x39] sm:$0xff]
    %v1911 = vld [vmem:[%s1451 + $0x51] sm:$0xff]
    %v1912 = vld [vmem:[%s1451 + $0x69] sm:$0xff]
    %v1913 = vld [vmem:[%s1451 + $0x81] sm:$0xff]
    %v1914 = vld [vmem:[%s1451 + $0x99] sm:$0xff]
    %v1915 = vld [vmem:[%s1451 + $0xb1] sm:$0xff]
    %v1916 = vld [vmem:[%s1451 + $0xf9] sm:$0xff]
    %v1917 = vld [vmem:[%s1451 + $0x111] sm:$0xff]
    %v1918 = vld [vmem:[%s1451 + $0x129] sm:$0xff]
    %v1919 = vld [vmem:[%s1451 + $0x141] sm:$0xff]
    %v1920 = vld [vmem:[%s1451 + $0x159] sm:$0xff]
    %v1921 = vld [vmem:[%s1451 + $0x171] sm:$0xff]
    %v1922 = vld [vmem:[%s1451 + $0x189] sm:$0xff]
    %v1923 = vld [vmem:[%s1451 + $0x1a1] sm:$0xff]
    %s1924 = scalar_lea.vmem %s1, 128
    %v1925 = vld [vmem:[%s1924] sm:$0xff]
    %v1926 = vld [vmem:[%s1924 + $0x8] sm:$0xff]
    %v1928 = vsel %vm21, %v1908, 0
    %v1931 = vsel %vm21, %v1909, 0
    %v1934 = vsel %vm21, %v1910, 0
    %v1937 = vsel %vm21, %v1911, 0
    %v1940 = vsel %vm21, %v1912, 0
    %v1943 = vsel %vm21, %v1913, 0
    %v1946 = vsel %vm21, %v1914, 0
    %v1949 = vsel %vm21, %v1915, 0
    %v1952 = vsel %vm21, %v1916, 0
    %v1955 = vsel %vm21, %v1917, 0
    %v1958 = vsel %vm21, %v1918, 0
    %v1961 = vsel %vm21, %v1919, 0
    %v1964 = vsel %vm21, %v1920, 0
    %v1967 = vsel %vm21, %v1921, 0
    %v1970 = vsel %vm21, %v1922, 0
    %v1973 = vsel %vm21, %v1923, 0
    %1975 = vmatprep.subr.mxu0 0.0
    %1976 = vmatpush1.msra.mxu0 %v1925
    %1977 = vmatprep.subr.mxu0 0.0
    %1978 = vmatpush1.msra.mxu0 %v1926
    %1979 = vmatprep.subr.mxu0 0.0
    %1980 = vmatpush1.msra.mxu0 0.0
    %1981 = vmatprep.subr.mxu0 0.0
    %1982 = vmatpush1.msra.mxu0 0.0
    %1983 = vmatprep.subr.mxu0 0.0
    %1984 = vmatpush1.msra.mxu0 0.0
    %1985 = vmatprep.subr.mxu0 0.0
    %1986 = vmatpush1.msra.mxu0 0.0
    %1987 = vmatprep.subr.mxu0 0.0
    %1988 = vmatpush1.msra.mxu0 0.0
    %1989 = vmatprep.subr.mxu0 0.0
    %1990 = vmatpush1.msra.mxu0 0.0
    %1991 = vmatprep.subr.mxu0 0.0
    %1992 = vmatpush1.msra.mxu0 0.0
    %1993 = vmatprep.subr.mxu0 0.0
    %1994 = vmatpush1.msra.mxu0 0.0
    %1995 = vmatprep.subr.mxu0 0.0
    %1996 = vmatpush1.msra.mxu0 0.0
    %1997 = vmatprep.subr.mxu0 0.0
    %1998 = vmatpush1.msra.mxu0 0.0
    %1999 = vmatprep.subr.mxu0 0.0
    %2000 = vmatpush1.msra.mxu0 0.0
    %2001 = vmatprep.subr.mxu0 0.0
    %2002 = vmatpush1.msra.mxu0 0.0
    %2003 = vmatprep.subr.mxu0 0.0
    %2004 = vmatpush1.msra.mxu0 0.0
    %2005 = vmatprep.subr.mxu0 0.0
    %2006 = vmatpush1.msra.mxu0 0.0
    %2007 = vmatprep.subr.mxu0 0.0
    %2008 = vmatpush1.msra.mxu0 0.0
    %2009 = vmatprep.subr.mxu0 0.0
    %2010 = vmatpush1.msra.mxu0 0.0
    %2011 = vmatprep.subr.mxu0 0.0
    %2012 = vmatpush1.msra.mxu0 0.0
    %2013 = vmatprep.subr.mxu0 0.0
    %2014 = vmatpush1.msra.mxu0 0.0
    %2015 = vmatprep.subr.mxu0 0.0
    %2016 = vmatpush1.msra.mxu0 0.0
    %2017 = vmatprep.subr.mxu0 0.0
    %2018 = vmatpush1.msra.mxu0 0.0
    %2019 = vmatprep.subr.mxu0 0.0
    %2020 = vmatpush1.msra.mxu0 0.0
    %2021 = vmatprep.subr.mxu0 0.0
    %2022 = vmatpush1.msra.mxu0 0.0
    %2023 = vmatprep.subr.mxu0 0.0
    %2024 = vmatpush1.msra.mxu0 0.0
    %2025 = vmatprep.subr.mxu0 0.0
    %2026 = vmatpush1.msra.mxu0 0.0
    %2027 = vmatprep.subr.mxu0 0.0
    %2028 = vmatpush1.msra.mxu0 0.0
    %2029 = vmatprep.subr.mxu0 0.0
    %2030 = vmatpush1.msra.mxu0 0.0
    %2031 = vmatprep.subr.mxu0 0.0
    %2032 = vmatpush1.msra.mxu0 0.0
    %2033 = vmatprep.subr.mxu0 0.0
    %2034 = vmatpush1.msra.mxu0 0.0
    %2035 = vmatprep.subr.mxu0 0.0
    %2036 = vmatpush1.msra.mxu0 0.0
    %2037 = vmatprep.subr.mxu0 0.0
    %2038 = vmatpush1.msra.mxu0 0.0
    %2039 = vmatprep.mubr.f32.mxu0 0.0
    %2040 = vmatmul.mubr.f32.gmra.mrb[0].mxu0 %v1928
    %v2041 = vpop.f32.mrb[0].mxu0
    %v2042 = vadd.f32 0.0, %v2041
    %v2043 = vpop.f32.mrb[0].mxu0
    %2044 = vmatprep.mubr.f32.mxu0 0.0
    %2045 = vmatmul.mubr.f32.gmra.mrb[0].mxu0 %v1931
    %v2046 = vpop.f32.mrb[0].mxu0
    %v2047 = vadd.f32 0.0, %v2046
    %v2048 = vpop.f32.mrb[0].mxu0
    %2049 = vmatprep.mubr.f32.mxu0 0.0
    %2050 = vmatmul.mubr.f32.gmra.mrb[0].mxu0 %v1934
    %v2051 = vpop.f32.mrb[0].mxu0
    %v2052 = vadd.f32 0.0, %v2051
    %v2053 = vpop.f32.mrb[0].mxu0
    %2054 = vmatprep.mubr.f32.mxu0 0.0
    %2055 = vmatmul.mubr.f32.gmra.mrb[0].mxu0 %v1937
    %v2056 = vpop.f32.mrb[0].mxu0
    %v2057 = vadd.f32 0.0, %v2056
    %v2058 = vpop.f32.mrb[0].mxu0
    %2059 = vmatprep.mubr.f32.mxu0 0.0
    %2060 = vmatmul.mubr.f32.gmra.mrb[0].mxu0 %v1940
    %v2061 = vpop.f32.mrb[0].mxu0
    %v2062 = vadd.f32 0.0, %v2061
    %v2063 = vpop.f32.mrb[0].mxu0
    %2064 = vmatprep.mubr.f32.mxu0 0.0
    %2065 = vmatmul.mubr.f32.gmra.mrb[0].mxu0 %v1943
    %v2066 = vpop.f32.mrb[0].mxu0
    %v2067 = vadd.f32 0.0, %v2066
    %v2068 = vpop.f32.mrb[0].mxu0
    %2069 = vmatprep.mubr.f32.mxu0 0.0
    %2070 = vmatmul.mubr.f32.gmra.mrb[0].mxu0 %v1946
    %v2071 = vpop.f32.mrb[0].mxu0
    %v2072 = vadd.f32 0.0, %v2071
    %v2073 = vpop.f32.mrb[0].mxu0
    %2074 = vmatprep.mubr.f32.mxu0 0.0
    %2075 = vmatmul.mubr.f32.gmra.mrb[0].mxu0 %v1949
    %v2076 = vpop.f32.mrb[0].mxu0
    %v2077 = vadd.f32 0.0, %v2076
    %v2078 = vpop.f32.mrb[0].mxu0
    %2079 = vmatprep.mubr.f32.mxu0 0.0
    %2080 = vmatmul.mubr.f32.gmra.mrb[0].mxu0 %v1952
    %v2081 = vpop.f32.mrb[0].mxu0
    %v2082 = vadd.f32 0.0, %v2081
    %v2083 = vpop.f32.mrb[0].mxu0
    %2084 = vmatprep.mubr.f32.mxu0 0.0
    %2085 = vmatmul.mubr.f32.gmra.mrb[0].mxu0 %v1955
    %v2086 = vpop.f32.mrb[0].mxu0
    %v2087 = vadd.f32 0.0, %v2086
    %v2088 = vpop.f32.mrb[0].mxu0
    %2089 = vmatprep.mubr.f32.mxu0 0.0
    %2090 = vmatmul.mubr.f32.gmra.mrb[0].mxu0 %v1958
    %v2091 = vpop.f32.mrb[0].mxu0
    %v2092 = vadd.f32 0.0, %v2091
    %v2093 = vpop.f32.mrb[0].mxu0
    %2094 = vmatprep.mubr.f32.mxu0 0.0
    %2095 = vmatmul.mubr.f32.gmra.mrb[0].mxu0 %v1961
    %v2096 = vpop.f32.mrb[0].mxu0
    %v2097 = vadd.f32 0.0, %v2096
    %v2098 = vpop.f32.mrb[0].mxu0
    %2099 = vmatprep.mubr.f32.mxu0 0.0
    %2100 = vmatmul.mubr.f32.gmra.mrb[0].mxu0 %v1964
    %v2101 = vpop.f32.mrb[0].mxu0
    %v2102 = vadd.f32 0.0, %v2101
    %v2103 = vpop.f32.mrb[0].mxu0
    %2104 = vmatprep.mubr.f32.mxu0 0.0
    %2105 = vmatmul.mubr.f32.gmra.mrb[0].mxu0 %v1967
    %v2106 = vpop.f32.mrb[0].mxu0
    %v2107 = vadd.f32 0.0, %v2106
    %v2108 = vpop.f32.mrb[0].mxu0
    %2109 = vmatprep.mubr.f32.mxu0 0.0
    %2110 = vmatmul.mubr.f32.gmra.mrb[0].mxu0 %v1970
    %v2111 = vpop.f32.mrb[0].mxu0
    %v2112 = vadd.f32 0.0, %v2111
    %v2113 = vpop.f32.mrb[0].mxu0
    %2114 = vmatprep.mubr.f32.mxu0 0.0
    %2115 = vmatmul.mubr.f32.gmra.mrb[0].mxu0 %v1973
    %v2116 = vpop.f32.mrb[0].mxu0
    %v2117 = vadd.f32 0.0, %v2116
    %v2118 = vpop.f32.mrb[0].mxu0
    %2119 = vdwg.mxu0
    %v2120 = vadd.f32 %v1892, %v2042
    %v2121 = vadd.f32 %v1893, %v2047
    %v2122 = vadd.f32 %v1894, %v2052
    %v2123 = vadd.f32 %v1895, %v2057
    %v2124 = vadd.f32 %v1896, %v2062
    %v2125 = vadd.f32 %v1897, %v2067
    %v2126 = vadd.f32 %v1898, %v2072
    %v2127 = vadd.f32 %v1899, %v2077
    %v2128 = vadd.f32 %v1900, %v2082
    %v2129 = vadd.f32 %v1901, %v2087
    %v2130 = vadd.f32 %v1902, %v2092
    %v2131 = vadd.f32 %v1903, %v2097
    %v2132 = vadd.f32 %v1904, %v2102
    %v2133 = vadd.f32 %v1905, %v2107
    %v2134 = vadd.f32 %v1906, %v2112
    %v2135 = vadd.f32 %v1907, %v2117
    %v2136 = vsel %vm21, %v2120, 0.0
    %v2137 = vsel %vm21, %v2121, 0.0
    %v2138 = vadd.f32 %v2136, %v2137
    %v2139 = vsel %vm21, %v2122, 0.0
    %v2140 = vadd.f32 %v2138, %v2139
    %v2141 = vsel %vm21, %v2123, 0.0
    %v2142 = vadd.f32 %v2140, %v2141
    %v2143 = vsel %vm21, %v2124, 0.0
    %v2144 = vadd.f32 %v2142, %v2143
    %v2145 = vsel %vm21, %v2125, 0.0
    %v2146 = vadd.f32 %v2144, %v2145
    %v2147 = vsel %vm21, %v2126, 0.0
    %v2148 = vadd.f32 %v2146, %v2147
    %v2149 = vsel %vm21, %v2127, 0.0
    %v2150 = vadd.f32 %v2148, %v2149
    %v2151 = vsel %vm21, %v2128, 0.0
    %v2152 = vadd.f32 %v2150, %v2151
    %v2153 = vsel %vm21, %v2129, 0.0
    %v2154 = vadd.f32 %v2152, %v2153
    %v2155 = vsel %vm21, %v2130, 0.0
    %v2156 = vadd.f32 %v2154, %v2155
    %v2157 = vsel %vm21, %v2131, 0.0
    %v2158 = vadd.f32 %v2156, %v2157
    %v2159 = vsel %vm21, %v2132, 0.0
    %v2160 = vadd.f32 %v2158, %v2159
    %v2161 = vsel %vm21, %v2133, 0.0
    %v2162 = vadd.f32 %v2160, %v2161
    %v2163 = vsel %vm21, %v2134, 0.0
    %v2164 = vadd.f32 %v2162, %v2163
    %v2165 = vsel %vm21, %v2135, 0.0
    %v2166 = vadd.f32 %v2164, %v2165
    %v2167 = vrot.slane %v2166, 4
    %v2168 = vadd.f32 %v2166, %v2167
    %v2169 = vrot.slane %v2168, 2
    %v2170 = vadd.f32 %v2168, %v2169
    %v2171 = vrot.slane %v2170, 1
    %v2172 = vadd.f32 %v2170, %v2171
    %v2173 = vmul.f32 %v2172, 0.0078125
    %v2174 = vmul.f32 %v2120, %v2120
    %v2175 = vmul.f32 %v2121, %v2121
    %v2176 = vmul.f32 %v2122, %v2122
    %v2177 = vmul.f32 %v2123, %v2123
    %v2178 = vmul.f32 %v2124, %v2124
    %v2179 = vmul.f32 %v2125, %v2125
    %v2180 = vmul.f32 %v2126, %v2126
    %v2181 = vmul.f32 %v2127, %v2127
    %v2182 = vmul.f32 %v2128, %v2128
    %v2183 = vmul.f32 %v2129, %v2129
    %v2184 = vmul.f32 %v2130, %v2130
    %v2185 = vmul.f32 %v2131, %v2131
    %v2186 = vmul.f32 %v2132, %v2132
    %v2187 = vmul.f32 %v2133, %v2133
    %v2188 = vmul.f32 %v2134, %v2134
    %v2189 = vmul.f32 %v2135, %v2135
    %v2190 = vsel %vm21, %v2174, 0.0
    %v2191 = vsel %vm21, %v2175, 0.0
    %v2192 = vadd.f32 %v2190, %v2191
    %v2193 = vsel %vm21, %v2176, 0.0
    %v2194 = vadd.f32 %v2192, %v2193
    %v2195 = vsel %vm21, %v2177, 0.0
    %v2196 = vadd.f32 %v2194, %v2195
    %v2197 = vsel %vm21, %v2178, 0.0
    %v2198 = vadd.f32 %v2196, %v2197
    %v2199 = vsel %vm21, %v2179, 0.0
    %v2200 = vadd.f32 %v2198, %v2199
    %v2201 = vsel %vm21, %v2180, 0.0
    %v2202 = vadd.f32 %v2200, %v2201
    %v2203 = vsel %vm21, %v2181, 0.0
    %v2204 = vadd.f32 %v2202, %v2203
    %v2205 = vsel %vm21, %v2182, 0.0
    %v2206 = vadd.f32 %v2204, %v2205
    %v2207 = vsel %vm21, %v2183, 0.0
    %v2208 = vadd.f32 %v2206, %v2207
    %v2209 = vsel %vm21, %v2184, 0.0
    %v2210 = vadd.f32 %v2208, %v2209
    %v2211 = vsel %vm21, %v2185, 0.0
    %v2212 = vadd.f32 %v2210, %v2211
    %v2213 = vsel %vm21, %v2186, 0.0
    %v2214 = vadd.f32 %v2212, %v2213
    %v2215 = vsel %vm21, %v2187, 0.0
    %v2216 = vadd.f32 %v2214, %v2215
    %v2217 = vsel %vm21, %v2188, 0.0
    %v2218 = vadd.f32 %v2216, %v2217
    %v2219 = vsel %vm21, %v2189, 0.0
    %v2220 = vadd.f32 %v2218, %v2219
    %v2221 = vrot.slane %v2220, 4
    %v2222 = vadd.f32 %v2220, %v2221
    %v2223 = vrot.slane %v2222, 2
    %v2224 = vadd.f32 %v2222, %v2223
    %v2225 = vrot.slane %v2224, 1
    %v2226 = vadd.f32 %v2224, %v2225
    %v2227 = vmul.f32 %v2226, 0.0078125
    %v2228 = vmul.f32 %v2173, %v2173
    %v2229 = vsub.f32 %v2227, %v2228
    %v2230 = vld [vmem:[%s3] sm:$0x1]
    %v2231 = vadd.f32 %v2229, 1e-05
    %v2232 = vrsqrt.pop %v2231
    %v2233 = vmul.f32 %v2230, %v2232
    %v2234 = vld [vmem:[%s4] sm:$0x3]
    %v2235 = vld [vmem:[%s2] sm:$0xff]
    %v2236 = vld [vmem:[%s2 + $0x8] sm:$0x3]
    %v2237 = vld [vmem:[%s3 + $0x2] sm:$0x1]
    %v2238 = vlaneseq
    %v2239 = vshrl.u32 %v2238, 7
    %v2240 = vsub.s32 0, %v2239
    %v2241 = vrot.slane %v2237, %v2240
    %vm2242 = vcmask 80896
    %v2244 = vsel %vm2242, %v2234, 0
    %vm2246 = vcmask 1041408
    %v2248 = vsel %vm2246, %v2236, 0
    %2250 = vmatprep.subr.mxu0 0.0
    %2251 = vmatpush1.msra.mxu0 %v2235
    %2252 = vmatprep.subr.mxu0 0.0
    %2253 = vmatpush1.msra.mxu0 %v2248
    %2254 = vmatprep.subr.mxu0 0.0
    %2255 = vmatpush1.msra.mxu0 0.0
    %2256 = vmatprep.subr.mxu0 0.0
    %2257 = vmatpush1.msra.mxu0 0.0
    %2258 = vmatprep.subr.mxu0 0.0
    %2259 = vmatpush1.msra.mxu0 0.0
    %2260 = vmatprep.subr.mxu0 0.0
    %2261 = vmatpush1.msra.mxu0 0.0
    %2262 = vmatprep.subr.mxu0 0.0
    %2263 = vmatpush1.msra.mxu0 0.0
    %2264 = vmatprep.subr.mxu0 0.0
    %2265 = vmatpush1.msra.mxu0 0.0
    %2266 = vmatprep.subr.mxu0 0.0
    %2267 = vmatpush1.msra.mxu0 0.0
    %2268 = vmatprep.subr.mxu0 0.0
    %2269 = vmatpush1.msra.mxu0 0.0
    %2270 = vmatprep.subr.mxu0 0.0
    %2271 = vmatpush1.msra.mxu0 0.0
    %2272 = vmatprep.subr.mxu0 0.0
    %2273 = vmatpush1.msra.mxu0 0.0
    %2274 = vmatprep.subr.mxu0 0.0
    %2275 = vmatpush1.msra.mxu0 0.0
    %2276 = vmatprep.subr.mxu0 0.0
    %2277 = vmatpush1.msra.mxu0 0.0
    %2278 = vmatprep.subr.mxu0 0.0
    %2279 = vmatpush1.msra.mxu0 0.0
    %2280 = vmatprep.subr.mxu0 0.0
    %2281 = vmatpush1.msra.mxu0 0.0
    %2282 = vmatprep.subr.mxu0 0.0
    %2283 = vmatpush1.msra.mxu0 0.0
    %2284 = vmatprep.subr.mxu0 0.0
    %2285 = vmatpush1.msra.mxu0 0.0
    %2286 = vmatprep.subr.mxu0 0.0
    %2287 = vmatpush1.msra.mxu0 0.0
    %2288 = vmatprep.subr.mxu0 0.0
    %2289 = vmatpush1.msra.mxu0 0.0
    %2290 = vmatprep.subr.mxu0 0.0
    %2291 = vmatpush1.msra.mxu0 0.0
    %2292 = vmatprep.subr.mxu0 0.0
    %2293 = vmatpush1.msra.mxu0 0.0
    %2294 = vmatprep.subr.mxu0 0.0
    %2295 = vmatpush1.msra.mxu0 0.0
    %2296 = vmatprep.subr.mxu0 0.0
    %2297 = vmatpush1.msra.mxu0 0.0
    %2298 = vmatprep.subr.mxu0 0.0
    %2299 = vmatpush1.msra.mxu0 0.0
    %2300 = vmatprep.subr.mxu0 0.0
    %2301 = vmatpush1.msra.mxu0 0.0
    %2302 = vmatprep.subr.mxu0 0.0
    %2303 = vmatpush1.msra.mxu0 0.0
    %2304 = vmatprep.subr.mxu0 0.0
    %2305 = vmatpush1.msra.mxu0 0.0
    %2306 = vmatprep.subr.mxu0 0.0
    %2307 = vmatpush1.msra.mxu0 0.0
    %2308 = vmatprep.subr.mxu0 0.0
    %2309 = vmatpush1.msra.mxu0 0.0
    %2310 = vmatprep.subr.mxu0 0.0
    %2311 = vmatpush1.msra.mxu0 0.0
    %2312 = vmatprep.subr.mxu0 0.0
    %2313 = vmatpush1.msra.mxu0 0.0
    %2314 = vmatprep.mubr.f32.mxu0 0.0
    %2315 = vmatmul.mubr.f32.gmra.mrb[0].mxu0 %v2244
    %v2316 = vpop.f32.mrb[0].mxu0
    %v2317 = vadd.f32 %v2241, %v2316
    %v2318 = vpop.f32.mrb[0].mxu0
    %2319 = vdwg.mxu0
    %v2320 = vld [vmem:[%s3 + $0x1] sm:$0x1]
    %v2321 = vmul.f32 %v2173, %v2233
    %v2322 = vsub.f32 %v2320, %v2321
    %v2323 = vlaneseq
    %v2324 = vshrl.u32 %v2323, 7
    %v2325 = vsub.s32 0, %v2324
    %v2326 = vrot.slane %v2322, %v2325
    %v2327 = vadd.f32 %v2326, %v2317
    %v2328 = vlaneseq
    %v2329 = vshrl.u32 %v2328, 7
    %v2330 = vsub.s32 0, %v2329
    %v2331 = vrot.slane %v2233, %v2330
    %v2332 = vmul.f32 %v2120, %v2331
    %v2333 = vmul.f32 %v2121, %v2331
    %v2334 = vmul.f32 %v2122, %v2331
    %v2335 = vmul.f32 %v2123, %v2331
    %v2336 = vmul.f32 %v2124, %v2331
    %v2337 = vmul.f32 %v2125, %v2331
    %v2338 = vmul.f32 %v2126, %v2331
    %v2339 = vmul.f32 %v2127, %v2331
    %v2340 = vmul.f32 %v2128, %v2331
    %v2341 = vmul.f32 %v2129, %v2331
    %v2342 = vmul.f32 %v2130, %v2331
    %v2343 = vmul.f32 %v2131, %v2331
    %v2344 = vmul.f32 %v2132, %v2331
    %v2345 = vmul.f32 %v2133, %v2331
    %v2346 = vmul.f32 %v2134, %v2331
    %v2347 = vmul.f32 %v2135, %v2331
    %v2350 = vunpack.c.l.s4 1966171168
    %v2351 = vunpack.c.0.s8 %v2350
    %v2352 = vlaneseq
    %v2353 = vshrl.u32 %v2352, 7
    %v2354 = vsub.s32 %v2351, %v2353
    %v2355 = vrot.slane %v2327, %v2354
    %v2356 = vcombine.high %v2355, %v2355
    %v2358 = vunpack.c.l.s4 1966171168
    %v2359 = vunpack.c.0.s8 %v2358
    %v2360 = vlaneseq
    %v2361 = vshrl.u32 %v2360, 7
    %v2362 = vsub.s32 %v2359, %v2361
    %v2363 = vrot.slane %v2355, %v2362
    %v2365 = vunpack.c.l.s4 1966171168
    %v2366 = vunpack.c.0.s8 %v2365
    %v2367 = vlaneseq
    %v2368 = vshrl.u32 %v2367, 7
    %v2369 = vsub.s32 %v2366, %v2368
    %v2370 = vrot.slane %v2356, %v2369
    %v2371 = vlaneseq
    %v2372 = vshrl.u32 %v2371, 7
    %v2373 = vsub.s32 0, %v2372
    %v2374 = vrot.slane %v2363, %v2373
    %v2375 = vlaneseq
    %v2376 = vshrl.u32 %v2375, 7
    %v2377 = vsub.s32 0, %v2376
    %v2378 = vrot.slane %v2370, %v2377
    %v2381 = vadd.f32 %v2332, %v2374
    %v2382 = vadd.f32 %v2333, %v2374
    %v2383 = vadd.f32 %v2334, %v2374
    %v2384 = vadd.f32 %v2335, %v2374
    %v2385 = vadd.f32 %v2336, %v2374
    %v2386 = vadd.f32 %v2337, %v2374
    %v2387 = vadd.f32 %v2338, %v2374
    %v2388 = vadd.f32 %v2339, %v2374
    %v2389 = vadd.f32 %v2340, %v2378
    %v2390 = vadd.f32 %v2341, %v2378
    %v2391 = vadd.f32 %v2342, %v2378
    %v2392 = vadd.f32 %v2343, %v2378
    %v2393 = vadd.f32 %v2344, %v2378
    %v2394 = vadd.f32 %v2345, %v2378
    %v2395 = vadd.f32 %v2346, %v2378
    %v2396 = vadd.f32 %v2347, %v2378
    %2397 = vst.msk [vmem:[#allocation3] sm:$0xff] %vm21, %v2381
    %2398 = vst.msk [vmem:[#allocation3 + $0x8] sm:$0xff] %vm21, %v2382
    %2399 = vst.msk [vmem:[#allocation3 + $0x10] sm:$0xff] %vm21, %v2383
    %2400 = vst.msk [vmem:[#allocation3 + $0x18] sm:$0xff] %vm21, %v2384
    %2401 = vst.msk [vmem:[#allocation3 + $0x20] sm:$0xff] %vm21, %v2385
    %2402 = vst.msk [vmem:[#allocation3 + $0x28] sm:$0xff] %vm21, %v2386
    %2403 = vst.msk [vmem:[#allocation3 + $0x30] sm:$0xff] %vm21, %v2387
    %2404 = vst.msk [vmem:[#allocation3 + $0x38] sm:$0xff] %vm21, %v2388
    %2405 = vst.msk [vmem:[#allocation3 + $0x40] sm:$0xff] %vm21, %v2389
    %2406 = vst.msk [vmem:[#allocation3 + $0x48] sm:$0xff] %vm21, %v2390
    %2407 = vst.msk [vmem:[#allocation3 + $0x50] sm:$0xff] %vm21, %v2391
    %2408 = vst.msk [vmem:[#allocation3 + $0x58] sm:$0xff] %vm21, %v2392
    %2409 = vst.msk [vmem:[#allocation3 + $0x60] sm:$0xff] %vm21, %v2393
    %2410 = vst.msk [vmem:[#allocation3 + $0x68] sm:$0xff] %vm21, %v2394
    %2411 = vst.msk [vmem:[#allocation3 + $0x70] sm:$0xff] %vm21, %v2395
    %2412 = vst.msk [vmem:[#allocation3 + $0x78] sm:$0xff] %vm21, %v2396
    // Predicated region
    $region22: #{conv_less_forward.1} parent=1 // pred_check
      _
    $region23: #{conv_less_forward.1} parent=1 // pred_check_branch
      %2414 = sbr.rel (0) target = $region25
    $region24: #{conv_less_forward.1} parent=1 // pred_region
      %s2416 = ssub.s32 2048, 2048
      %2417 = vsyncadd [#allocation4], %s2416
      %s2418 = sshll.u32 [#allocation3], 4
      %s2419 = int_to_ptr.vmem [resolvable:$true] %s2418
      %2424 = dma.vmem_to_hbm [thread:$0]  %s2419, 2048, %s5, [#allocation4], 128, 128, 8
    $region25: #{conv_less_forward.1} parent=1 // pred_fallthru
      _
    // Predicated region
    $region26: #{conv_less_forward.1} parent=1 // pred_check
      _
    $region27: #{conv_less_forward.1} parent=1 // pred_check_branch
      %2426 = sbr.rel (0) target = $region29
    $region28: #{conv_less_forward.1} parent=1 // pred_region
      %2427 = dma.done [#allocation4], 2048
    $region29: #{conv_less_forward.1} parent=1 // pred_fallthru
      _
    %2428 = vsyncpa [#allocation4], 1

</llo_original>
